<compile_context>
chip_gen: v7x
topology: tpu7x:2x2x1
jax: 0.10.0
libtpu: 0.0.40
codegen_flags: <defaults>
</compile_context>

<pallas_src>
import functools
import inspect
import math

import numpy as np
import jax
import jax.numpy as jnp
from jax.experimental import pallas as pl
from jax.experimental.pallas import tpu as pltpu


# ---------------------------------------------------------------------------
# Kernel
# ---------------------------------------------------------------------------
def transformer_layer_kernel(
    x_ref,             # (1, S, D)   full sequence of the current batch element (compute dtype)
    g1_ref, be1_ref,   # (1, D)      layernorm1 gamma / beta (f32)
    wq_ref, bq_ref,    # (D, D), (1, D)       packed Q projection, 1/sqrt(hd) pre-folded
    wk_ref, bk_ref,    # (D, D), (1, D)       packed K projection
    wv_ref, bv_ref,    # (D, D), (1, D)       packed V projection
    wo_ref, bo_ref,    # (D, D), (1, D)       output projection
    g2_ref, be2_ref,   # (1, D)      layernorm2 gamma / beta (f32)
    w1_ref, bm1_ref,   # (D, Hid), (1, Hid)   MLP layer 1
    w2_ref, bm2_ref,   # (Hid, D), (1, D)     MLP layer 2
    o_ref,             # (1, TQ, D)
    k_scr,             # VMEM (S, D) compute dtype -- persistent K cache (per batch element)
    v_scr,             # VMEM (S, D) compute dtype -- persistent V cache (per batch element)
    mh_scr,            # VMEM (TQ, D) compute dtype -- multi-head output slab (no concat)
    *, num_heads, q_tile, softmax_dtype,
):
    eps = 1e-5
    cdt = wq_ref.dtype                       # compute dtype for MXU operands (bf16 or f32)
    model_dim = wq_ref.shape[0]
    head_dim = model_dim // num_heads
    TQ = q_tile
    qi = pl.program_id(1)

    def layer_norm(v, g_ref, b_ref):
        mu = jnp.mean(v, axis=-1, keepdims=True)
        var = jnp.mean(jnp.square(v - mu), axis=-1, keepdims=True)
        return (v - mu) * jax.lax.rsqrt(var + eps) * g_ref[...] + b_ref[...]

    # ---- Build the K/V cache once per batch element (first query tile only) ----
    @pl.when(qi == 0)
    def _build_kv():
        xs = x_ref[0].astype(jnp.float32)                        # (S, D) f32
        xn = layer_norm(xs, g1_ref, be1_ref).astype(cdt)         # (S, D) compute dtype
        # Two separate matmuls, each result cast to the compute dtype immediately
        # (halves peak f32 activation footprint vs. a fused (D,2D) projection).
        k = jnp.dot(xn, wk_ref[...], preferred_element_type=jnp.float32) + bk_ref[...]
        k_scr[...] = k.astype(cdt)
        v = jnp.dot(xn, wv_ref[...], preferred_element_type=jnp.float32) + bv_ref[...]
        v_scr[...] = v.astype(cdt)

    # ---- LayerNorm 1 + Q projection for this query tile ----
    q_start = pl.multiple_of(qi * TQ, TQ)
    xq = x_ref[0, pl.ds(q_start, TQ), :].astype(jnp.float32)     # (TQ, D) f32
    xnq = layer_norm(xq, g1_ref, be1_ref)                        # kept f32 for the residual
    q = jnp.dot(xnq.astype(cdt), wq_ref[...],
                preferred_element_type=jnp.float32) + bq_ref[...]  # (TQ, D), already 1/sqrt(hd)-scaled
    q_c = q.astype(cdt)

    # ---- Per-head attention, heads written into the VMEM slab (no concatenate) ----
    # Static head loop with static lane slices (lowering-safe for any head_dim); each head's
    # temporaries die at the mh_scr store.
    # TODO(synk): for large num_heads, switch to lax.fori_loop over 128-aligned head slices
    #             (bounds live ranges / vreg spills); for v7x long sequences, use a KV-tiled
    #             online-softmax inner loop so VMEM is O(TQ*TK) independent of S.
    # TODO(synk): on v5e with head_dim < 128, pair adjacent heads into one 128-lane mh_scr store.
    for h in range(num_heads):
        sl = slice(h * head_dim, (h + 1) * head_dim)
        s = jax.lax.dot_general(
            q_c[:, sl], k_scr[:, sl],
            dimension_numbers=(((1,), (1,)), ((), ())),
            preferred_element_type=jnp.float32,
        )                                                         # (TQ, S) f32
        m = jnp.max(s, axis=-1, keepdims=True)
        p = jnp.exp((s - m).astype(softmax_dtype))                # bf16 exp on v6e/v7x, f32 on v5e
        inv = pl.reciprocal(
            jnp.sum(p, axis=-1, keepdims=True, dtype=jnp.float32), approx=True)   # (TQ, 1) f32
        o_h = jnp.dot(p.astype(cdt), v_scr[:, sl],
                      preferred_element_type=jnp.float32) * inv   # normalize after P@V (O(TQ*hd))
        mh_scr[:, sl] = o_h.astype(cdt)

    # ---- Output projection: one (TQ, D) x (D, D) matmul ----
    y = jnp.dot(mh_scr[...], wo_ref[...],
                preferred_element_type=jnp.float32) + bo_ref[...]  # (TQ, D) f32

    # Residual on the *normalized* input (matches `x = norm1(x); x += dropout1(y)`).
    x1 = xnq + y

    # ---- LayerNorm 2 ----
    x2 = layer_norm(x1, g2_ref, be2_ref)

    # ---- MLP ----
    h1 = jnp.dot(x2.astype(cdt), w1_ref[...],
                 preferred_element_type=jnp.float32) + bm1_ref[...]
    h1 = jnp.maximum(h1, 0.0)
    mlp = jnp.dot(h1.astype(cdt), w2_ref[...],
                  preferred_element_type=jnp.float32) + bm2_ref[...]

    o_ref[0] = (x2 + mlp).astype(o_ref.dtype)


# ---------------------------------------------------------------------------
# Hardware / feature queries (perf knobs only; never wrap the real kernel call)
# ---------------------------------------------------------------------------
def _tpu_vmem_capacity_bytes():
    """Physical VMEM bytes per core, or None if unavailable."""
    if not hasattr(pltpu, "get_tpu_info"):
        return None
    try:
        info = pltpu.get_tpu_info()
    except Exception:   # info query only; does not mask kernel failures
        return None
    for attr in ("vmem_capacity_bytes", "vmem_bytes"):
        cap = getattr(info, attr, None)
        if cap:
            return int(cap)
    return None


def _has_bf16_vector_units():
    """True on chips with bf16 VPU/EUP paths (v6e / v7x); False on v2-v5."""
    try:
        kind = jax.devices()[0].device_kind.lower()
    except Exception:
        return False
    return not any(tag in kind for tag in ("v2", "v3", "v4", "v5"))


@functools.lru_cache(maxsize=None)
def _supports_single_buffering():
    """Explicit feature probe: does this JAX lower pallas_call BlockSpecs with
    pipeline_mode=pl.Buffered(1)?  Probed on a trivial kernel so real failures in the
    transformer kernel are never masked."""
    if not hasattr(pl, "Buffered"):
        return False
    if "pipeline_mode" not in inspect.signature(pl.BlockSpec).parameters:
        return False
    try:
        spec = pl.BlockSpec((8, 128), lambda i: (0, 0), pipeline_mode=pl.Buffered(1))

        def _probe(x_ref, o_ref):
            o_ref[...] = x_ref[...]

        fn = pl.pallas_call(
            _probe,
            out_shape=jax.ShapeDtypeStruct((8, 128), jnp.float32),
            grid=(1,),
            in_specs=[spec],
            out_specs=pl.BlockSpec((8, 128), lambda i: (0, 0)),
        )
        jax.jit(fn).lower(jax.ShapeDtypeStruct((8, 128), jnp.float32))
        return True
    except Exception:
        return False


def _pick_q_tile(S, q_tile):
    """Largest multiple-of-8 divisor of S that is <= q_tile (block sublane constraint)."""
    if S <= q_tile:
        return S
    for t in range(min(q_tile, S - 1), 7, -1):
        if S % t == 0 and t % 8 == 0:
            return t
    # TODO(synk): pad/mask the sequence instead of falling back to a full-S tile.
    return S


# ---------------------------------------------------------------------------
# Wrapper: weight packing + pallas_call
# ---------------------------------------------------------------------------
def _pack_params(params, compute_dtype):
    """Pack per-head weights into lane-dense matrices; fold 1/sqrt(head_dim) into Q."""
    (g1, be1, wq, bq, wk, bk, wv, bv, wo, bo, g2, be2, w1, bm1, w2, bm2) = params
    H, D, hd = wq.shape
    scale = 1.0 / math.sqrt(hd)

    def merge_w(w):   # (H, D, hd) -> (D, H*hd); head h occupies columns [h*hd, (h+1)*hd)
        return jnp.transpose(w, (1, 0, 2)).reshape(D, H * hd)

    def merge_b(b):   # (H, 1, hd) -> (1, H*hd)
        return b.reshape(1, H * hd)

    f32 = jnp.float32
    packed = (
        g1.astype(f32), be1.astype(f32),
        (merge_w(wq) * scale).astype(compute_dtype), (merge_b(bq) * scale).astype(f32),
        merge_w(wk).astype(compute_dtype), merge_b(bk).astype(f32),
        merge_w(wv).astype(compute_dtype), merge_b(bv).astype(f32),
        wo.astype(compute_dtype), bo.astype(f32),
        g2.astype(f32), be2.astype(f32),
        w1.astype(compute_dtype), bm1.astype(f32),
        w2.astype(compute_dtype), bm2.astype(f32),
    )
    return packed, H


def _call(x, packed, num_heads, compute_dtype, softmax_dtype, q_tile):
    B, S, D = x.shape
    TQ = _pick_q_tile(S, q_tile)
    num_q_tiles = S // TQ

    vmem_cap = _tpu_vmem_capacity_bytes()
    vmem_limit = int(vmem_cap * 3 // 4) if vmem_cap else 64 * 1024 * 1024
    small_vmem = vmem_cap is not None and vmem_cap <= 80 * 1024 * 1024   # e.g. v7x (64 MiB)

    single_buf_ok = _supports_single_buffering()
    # Constant-index weight blocks gain nothing from double-buffering -> halve their footprint.
    weight_kw = dict(pipeline_mode=pl.Buffered(1)) if single_buf_ok else {}
    # The full-sequence x block only changes index once per S/TQ steps; single-buffer it where
    # VMEM is tight (v7x), keep the prefetch overlap on 128 MiB chips.
    x_kw = dict(pipeline_mode=pl.Buffered(1)) if (single_buf_ok and small_vmem) else {}

    def const_spec(shape, **kw):
        nd = len(shape)
        return pl.BlockSpec(shape, lambda b, q: (0,) * nd, **kw)

    in_specs = [pl.BlockSpec((1, S, D), lambda b, q: (b, 0, 0), **x_kw)]
    in_specs += [const_spec(w.shape, **weight_kw) for w in packed]

    kernel = functools.partial(
        transformer_layer_kernel,
        num_heads=num_heads, q_tile=TQ, softmax_dtype=softmax_dtype)

    x_in = x.astype(compute_dtype)   # halves HBM read traffic when compute dtype is bf16

    return pl.pallas_call(
        kernel,
        out_shape=jax.ShapeDtypeStruct((B, S, D), x.dtype),
        grid_spec=pltpu.PrefetchScalarGridSpec(
            num_scalar_prefetch=0,
            grid=(B, num_q_tiles),
            in_specs=in_specs,
            out_specs=pl.BlockSpec((1, TQ, D), lambda b, q: (b, q, 0)),
            scratch_shapes=[
                pltpu.VMEM((S, D), compute_dtype),    # K cache (persists across q tiles)
                pltpu.VMEM((S, D), compute_dtype),    # V cache
                pltpu.VMEM((TQ, D), compute_dtype),   # multi-head output slab
            ],
        ),
        compiler_params=pltpu.CompilerParams(
            # q axis must be "arbitrary": the K/V cache is built at q == 0 and reused afterwards.
            # TODO(synk): with B == 1 on v7x, split the q axis into an outer parallel factor of 2
            #             (with per-half KV rebuild) to keep both TensorCores busy.
            dimension_semantics=("parallel", "arbitrary"),
            vmem_limit_bytes=vmem_limit,
        ),
    )(x_in, *packed)


def transformer_layer(x, params, *, compute_dtype=jnp.bfloat16, softmax_dtype=None, q_tile=256):
    # q_tile default 256; 512 is often better on v5e/v6e (128 MiB VMEM), 128-256 on v7x.
    packed, num_heads = _pack_params(params, compute_dtype)
    if softmax_dtype is None:
        # bf16 exp/multiply only pays off on chips with bf16 EUP/VPU paths (v6e/v7x); f32 elsewhere.
        softmax_dtype = (jnp.bfloat16
                         if (compute_dtype == jnp.bfloat16 and _has_bf16_vector_units())
                         else jnp.float32)
    return _call(x, packed, num_heads, compute_dtype, softmax_dtype, q_tile)


# ---------------------------------------------------------------------------
# Params (PyTorch-equivalent, per-head layout) + pure-JAX reference
# ---------------------------------------------------------------------------
def make_params(key, model_dim, num_heads, mlp_inner_dim):
    head_dim = model_dim // num_heads
    keys = jax.random.split(key, 12)
    s = 0.1  # small weights for numerical sanity

    g1 = jnp.ones((1, model_dim), jnp.float32)
    be1 = jnp.zeros((1, model_dim), jnp.float32)
    g2 = jnp.ones((1, model_dim), jnp.float32)
    be2 = jnp.zeros((1, model_dim), jnp.float32)

    wq = s * jax.random.normal(keys[0], (num_heads, model_dim, head_dim), jnp.float32)
    bq = s * jax.random.normal(keys[1], (num_heads, 1, head_dim), jnp.float32)
    wk = s * jax.random.normal(keys[2], (num_heads, model_dim, head_dim), jnp.float32)
    bk = s * jax.random.normal(keys[3], (num_heads, 1, head_dim), jnp.float32)
    wv = s * jax.random.normal(keys[4], (num_heads, model_dim, head_dim), jnp.float32)
    bv = s * jax.random.normal(keys[5], (num_heads, 1, head_dim), jnp.float32)
    wo = s * jax.random.normal(keys[6], (model_dim, model_dim), jnp.float32)
    bo = s * jax.random.normal(keys[7], (1, model_dim), jnp.float32)
    w1 = s * jax.random.normal(keys[8], (model_dim, mlp_inner_dim), jnp.float32)
    bm1 = s * jax.random.normal(keys[9], (1, mlp_inner_dim), jnp.float32)
    w2 = s * jax.random.normal(keys[10], (mlp_inner_dim, model_dim), jnp.float32)
    bm2 = s * jax.random.normal(keys[11], (1, model_dim), jnp.float32)

    return (g1, be1, wq, bq, wk, bk, wv, bv, wo, bo, g2, be2, w1, bm1, w2, bm2)


def transformer_layer_ref(x, params):
    """Pure-JAX reference mirroring the PyTorch forward (eval-mode dropout)."""
    (g1, be1, wq, bq, wk, bk, wv, bv, wo, bo, g2, be2, w1, bm1, w2, bm2) = params
    eps = 1e-5

    def ln(v, g, b):
        mu = jnp.mean(v, axis=-1, keepdims=True)
        var = jnp.mean((v - mu) ** 2, axis=-1, keepdims=True)
        return (v - mu) / jnp.sqrt(var + eps) * g + b

    xn = ln(x, g1, be1)
    H, _, hd = wq.shape
    heads = []
    for h in range(H):
        q = xn @ wq[h] + bq[h]
        k = xn @ wk[h] + bk[h]
        v = xn @ wv[h] + bv[h]
        s = jnp.einsum("bij,bkj->bik", q, k) / np.sqrt(hd)
        att = jax.nn.softmax(s, axis=-1)
        heads.append(jnp.einsum("bij,bjk->bik", att, v))
    y = jnp.concatenate(heads, axis=-1) @ wo + bo
    x1 = xn + y
    x2 = ln(x1, g2, be2)
    mlp = jnp.maximum(x2 @ w1 + bm1, 0.0) @ w2 + bm2
    return x2 + mlp


# ---------------------------------------------------------------------------
# Test
# ---------------------------------------------------------------------------
if __name__ == "__main__":
    B, S, model_dim, num_heads, mlp_inner_dim = 2, 8, 32, 4, 64

    key = jax.random.PRNGKey(0)
    kx, kp = jax.random.split(key)
    x = jax.random.normal(kx, (B, S, model_dim), jnp.float32)
    params = make_params(kp, model_dim, num_heads, mlp_inner_dim)

    ref = transformer_layer_ref(x, params)

    # Exact-ish check with f32 MXU operands (only approx-reciprocal / reassociation differences).
    out_f32 = jax.block_until_ready(transformer_layer(x, params, compute_dtype=jnp.float32))
    np.testing.assert_allclose(np.asarray(out_f32), np.asarray(ref), rtol=5e-3, atol=5e-3)

    # Optimized default: bf16 MXU operands / activations, f32 accumulation.
    out_bf16 = jax.block_until_ready(transformer_layer(x, params))
    np.testing.assert_allclose(np.asarray(out_bf16), np.asarray(ref), rtol=5e-2, atol=5e-2)

    print("KERNEL_OK")
</pallas_src>

<mosaic_0001>
module attributes {stable_mosaic.version = 11 : i64} {
  func.func @transformer_layer_kernel(%arg0: i32, %arg1: i32, %arg2: memref<1x8x32xf32, #tpu.memory_space<vmem>>, %arg3: memref<1x32xf32, #tpu.memory_space<vmem>>, %arg4: memref<1x32xf32, #tpu.memory_space<vmem>>, %arg5: memref<32x32xf32, #tpu.memory_space<vmem>>, %arg6: memref<1x32xf32, #tpu.memory_space<vmem>>, %arg7: memref<32x32xf32, #tpu.memory_space<vmem>>, %arg8: memref<1x32xf32, #tpu.memory_space<vmem>>, %arg9: memref<32x32xf32, #tpu.memory_space<vmem>>, %arg10: memref<1x32xf32, #tpu.memory_space<vmem>>, %arg11: memref<32x32xf32, #tpu.memory_space<vmem>>, %arg12: memref<1x32xf32, #tpu.memory_space<vmem>>, %arg13: memref<1x32xf32, #tpu.memory_space<vmem>>, %arg14: memref<1x32xf32, #tpu.memory_space<vmem>>, %arg15: memref<32x64xf32, #tpu.memory_space<vmem>>, %arg16: memref<1x64xf32, #tpu.memory_space<vmem>>, %arg17: memref<64x32xf32, #tpu.memory_space<vmem>>, %arg18: memref<1x32xf32, #tpu.memory_space<vmem>>, %arg19: memref<1x8x32xf32, #tpu.memory_space<vmem>>, %arg20: memref<8x32xf32, #tpu.memory_space<vmem>>, %arg21: memref<8x32xf32, #tpu.memory_space<vmem>>, %arg22: memref<8x32xf32, #tpu.memory_space<vmem>>) attributes {dimension_semantics = [#tpu.dimension_semantics<parallel>, #tpu.dimension_semantics<arbitrary>], iteration_bounds = array<i64: 2, 1>, scalar_prefetch = 0 : i64, scratch_operands = 3 : i64, tpu.core_type = #tpu.core_type<tc>, window_params = [{transform_indices = @transform_0, window_bounds = array<i64: 1, 8, 32>}, {pipeline_mode = #tpu.pipeline_mode<synchronous>, transform_indices = @transform_1, window_bounds = array<i64: 1, 32>}, {pipeline_mode = #tpu.pipeline_mode<synchronous>, transform_indices = @transform_2, window_bounds = array<i64: 1, 32>}, {pipeline_mode = #tpu.pipeline_mode<synchronous>, transform_indices = @transform_3, window_bounds = array<i64: 32, 32>}, {pipeline_mode = #tpu.pipeline_mode<synchronous>, transform_indices = @transform_4, window_bounds = array<i64: 1, 32>}, {pipeline_mode = #tpu.pipeline_mode<synchronous>, transform_indices = @transform_5, window_bounds = array<i64: 32, 32>}, {pipeline_mode = #tpu.pipeline_mode<synchronous>, transform_indices = @transform_6, window_bounds = array<i64: 1, 32>}, {pipeline_mode = #tpu.pipeline_mode<synchronous>, transform_indices = @transform_7, window_bounds = array<i64: 32, 32>}, {pipeline_mode = #tpu.pipeline_mode<synchronous>, transform_indices = @transform_8, window_bounds = array<i64: 1, 32>}, {pipeline_mode = #tpu.pipeline_mode<synchronous>, transform_indices = @transform_9, window_bounds = array<i64: 32, 32>}, {pipeline_mode = #tpu.pipeline_mode<synchronous>, transform_indices = @transform_10, window_bounds = array<i64: 1, 32>}, {pipeline_mode = #tpu.pipeline_mode<synchronous>, transform_indices = @transform_11, window_bounds = array<i64: 1, 32>}, {pipeline_mode = #tpu.pipeline_mode<synchronous>, transform_indices = @transform_12, window_bounds = array<i64: 1, 32>}, {pipeline_mode = #tpu.pipeline_mode<synchronous>, transform_indices = @transform_13, window_bounds = array<i64: 32, 64>}, {pipeline_mode = #tpu.pipeline_mode<synchronous>, transform_indices = @transform_14, window_bounds = array<i64: 1, 64>}, {pipeline_mode = #tpu.pipeline_mode<synchronous>, transform_indices = @transform_15, window_bounds = array<i64: 64, 32>}, {pipeline_mode = #tpu.pipeline_mode<synchronous>, transform_indices = @transform_16, window_bounds = array<i64: 1, 32>}, {transform_indices = @transform_17, window_bounds = array<i64: 1, 8, 32>}]} {
    %c0_i32 = arith.constant 0 : i32
    %0 = arith.cmpi eq, %arg1, %c0_i32 : i32
    %1 = arith.extui %0 : i1 to i32
    %c0_i32_0 = arith.constant 0 : i32
    %2 = arith.cmpi ne, %1, %c0_i32_0 : i32
    scf.if %2 {
      %c0_82 = arith.constant 0 : index
      %c0_83 = arith.constant 0 : index
      %c0_84 = arith.constant 0 : index
      %148 = vector.load %arg2[%c0_82, %c0_83, %c0_84] : memref<1x8x32xf32, #tpu.memory_space<vmem>>, vector<1x8x32xf32>
      %149 = vector.shape_cast %148 : vector<1x8x32xf32> to vector<8x32xf32>
      %cst_85 = arith.constant dense<0.000000e+00> : vector<8xf32>
      %150 = vector.multi_reduction <add>, %149, %cst_85 [1] : vector<8x32xf32> to vector<8xf32>
      %151 = vector.shape_cast %150 : vector<8xf32> to vector<8x1xf32>
      %cst_86 = arith.constant 3.200000e+01 : f32
      %152 = vector.broadcast %cst_86 : f32 to vector<8x1xf32>
      %153 = arith.divf %151, %152 : vector<8x1xf32>
      %154 = vector.broadcast %153 : vector<8x1xf32> to vector<8x32xf32>
      %155 = arith.subf %149, %154 : vector<8x32xf32>
      %156 = arith.mulf %155, %155 : vector<8x32xf32>
      %cst_87 = arith.constant dense<0.000000e+00> : vector<8xf32>
      %157 = vector.multi_reduction <add>, %156, %cst_87 [1] : vector<8x32xf32> to vector<8xf32>
      %158 = vector.shape_cast %157 : vector<8xf32> to vector<8x1xf32>
      %cst_88 = arith.constant 3.200000e+01 : f32
      %159 = vector.broadcast %cst_88 : f32 to vector<8x1xf32>
      %160 = arith.divf %158, %159 : vector<8x1xf32>
      %161 = vector.broadcast %153 : vector<8x1xf32> to vector<8x32xf32>
      %162 = arith.subf %149, %161 : vector<8x32xf32>
      %cst_89 = arith.constant 9.99999974E-6 : f32
      %163 = vector.broadcast %cst_89 : f32 to vector<8x1xf32>
      %164 = arith.addf %160, %163 : vector<8x1xf32>
      %165 = math.rsqrt %164 : vector<8x1xf32>
      %166 = vector.broadcast %165 : vector<8x1xf32> to vector<8x32xf32>
      %167 = arith.mulf %162, %166 : vector<8x32xf32>
      %c0_90 = arith.constant 0 : index
      %c0_91 = arith.constant 0 : index
      %168 = vector.load %arg3[%c0_90, %c0_91] : memref<1x32xf32, #tpu.memory_space<vmem>>, vector<1x32xf32>
      %169 = vector.broadcast %168 : vector<1x32xf32> to vector<8x32xf32>
      %170 = arith.mulf %167, %169 : vector<8x32xf32>
      %c0_92 = arith.constant 0 : index
      %c0_93 = arith.constant 0 : index
      %171 = vector.load %arg4[%c0_92, %c0_93] : memref<1x32xf32, #tpu.memory_space<vmem>>, vector<1x32xf32>
      %172 = vector.broadcast %171 : vector<1x32xf32> to vector<8x32xf32>
      %173 = arith.addf %170, %172 : vector<8x32xf32>
      %c0_94 = arith.constant 0 : index
      %c0_95 = arith.constant 0 : index
      %174 = vector.load %arg7[%c0_94, %c0_95] : memref<32x32xf32, #tpu.memory_space<vmem>>, vector<32x32xf32>
      %cst_96 = arith.constant dense<0.000000e+00> : vector<8x32xf32>
      %175 = tpu.matmul %173, %174, %cst_96 {dimension_numbers = #tpu.dot_dimension_numbers<[1], [0], [0], [1], [0, 0, 1, 1], [], []>} : vector<8x32xf32>, vector<32x32xf32>, vector<8x32xf32> -> vector<8x32xf32>
      %c0_97 = arith.constant 0 : index
      %c0_98 = arith.constant 0 : index
      %176 = vector.load %arg8[%c0_97, %c0_98] : memref<1x32xf32, #tpu.memory_space<vmem>>, vector<1x32xf32>
      %177 = vector.broadcast %176 : vector<1x32xf32> to vector<8x32xf32>
      %178 = arith.addf %175, %177 : vector<8x32xf32>
      %c0_99 = arith.constant 0 : index
      %c0_100 = arith.constant 0 : index
      %179 = vector.load %arg20[%c0_99, %c0_100] : memref<8x32xf32, #tpu.memory_space<vmem>>, vector<8x32xf32>
      tpu.vector_store %arg20[%c0_99, %c0_100], %178 {strides = array<i32>} : memref<8x32xf32, #tpu.memory_space<vmem>>, vector<8x32xf32>,
      %c0_101 = arith.constant 0 : index
      %c0_102 = arith.constant 0 : index
      %180 = vector.load %arg9[%c0_101, %c0_102] : memref<32x32xf32, #tpu.memory_space<vmem>>, vector<32x32xf32>
      %cst_103 = arith.constant dense<0.000000e+00> : vector<8x32xf32>
      %181 = tpu.matmul %173, %180, %cst_103 {dimension_numbers = #tpu.dot_dimension_numbers<[1], [0], [0], [1], [0, 0, 1, 1], [], []>} : vector<8x32xf32>, vector<32x32xf32>, vector<8x32xf32> -> vector<8x32xf32>
      %c0_104 = arith.constant 0 : index
      %c0_105 = arith.constant 0 : index
      %182 = vector.load %arg10[%c0_104, %c0_105] : memref<1x32xf32, #tpu.memory_space<vmem>>, vector<1x32xf32>
      %183 = vector.broadcast %182 : vector<1x32xf32> to vector<8x32xf32>
      %184 = arith.addf %181, %183 : vector<8x32xf32>
      %c0_106 = arith.constant 0 : index
      %c0_107 = arith.constant 0 : index
      %185 = vector.load %arg21[%c0_106, %c0_107] : memref<8x32xf32, #tpu.memory_space<vmem>>, vector<8x32xf32>
      tpu.vector_store %arg21[%c0_106, %c0_107], %184 {strides = array<i32>} : memref<8x32xf32, #tpu.memory_space<vmem>>, vector<8x32xf32>,
    } else {
    }
    %c8_i32 = arith.constant 8 : i32
    %3 = arith.muli %arg1, %c8_i32 : i32
    %4 = tpu.assume_multiple %3, 8 : i32
    %c0 = arith.constant 0 : index
    %5 = arith.index_cast %4 : i32 to index
    %c0_1 = arith.constant 0 : index
    %6 = vector.load %arg2[%c0, %5, %c0_1] : memref<1x8x32xf32, #tpu.memory_space<vmem>>, vector<1x8x32xf32>
    %7 = vector.shape_cast %6 : vector<1x8x32xf32> to vector<8x32xf32>
    %cst = arith.constant dense<0.000000e+00> : vector<8xf32>
    %8 = vector.multi_reduction <add>, %7, %cst [1] : vector<8x32xf32> to vector<8xf32>
    %9 = vector.shape_cast %8 : vector<8xf32> to vector<8x1xf32>
    %cst_2 = arith.constant 3.200000e+01 : f32
    %10 = vector.broadcast %cst_2 : f32 to vector<8x1xf32>
    %11 = arith.divf %9, %10 : vector<8x1xf32>
    %12 = vector.broadcast %11 : vector<8x1xf32> to vector<8x32xf32>
    %13 = arith.subf %7, %12 : vector<8x32xf32>
    %14 = arith.mulf %13, %13 : vector<8x32xf32>
    %cst_3 = arith.constant dense<0.000000e+00> : vector<8xf32>
    %15 = vector.multi_reduction <add>, %14, %cst_3 [1] : vector<8x32xf32> to vector<8xf32>
    %16 = vector.shape_cast %15 : vector<8xf32> to vector<8x1xf32>
    %cst_4 = arith.constant 3.200000e+01 : f32
    %17 = vector.broadcast %cst_4 : f32 to vector<8x1xf32>
    %18 = arith.divf %16, %17 : vector<8x1xf32>
    %19 = vector.broadcast %11 : vector<8x1xf32> to vector<8x32xf32>
    %20 = arith.subf %7, %19 : vector<8x32xf32>
    %cst_5 = arith.constant 9.99999974E-6 : f32
    %21 = vector.broadcast %cst_5 : f32 to vector<8x1xf32>
    %22 = arith.addf %18, %21 : vector<8x1xf32>
    %23 = math.rsqrt %22 : vector<8x1xf32>
    %24 = vector.broadcast %23 : vector<8x1xf32> to vector<8x32xf32>
    %25 = arith.mulf %20, %24 : vector<8x32xf32>
    %c0_6 = arith.constant 0 : index
    %c0_7 = arith.constant 0 : index
    %26 = vector.load %arg3[%c0_6, %c0_7] : memref<1x32xf32, #tpu.memory_space<vmem>>, vector<1x32xf32>
    %27 = vector.broadcast %26 : vector<1x32xf32> to vector<8x32xf32>
    %28 = arith.mulf %25, %27 : vector<8x32xf32>
    %c0_8 = arith.constant 0 : index
    %c0_9 = arith.constant 0 : index
    %29 = vector.load %arg4[%c0_8, %c0_9] : memref<1x32xf32, #tpu.memory_space<vmem>>, vector<1x32xf32>
    %30 = vector.broadcast %29 : vector<1x32xf32> to vector<8x32xf32>
    %31 = arith.addf %28, %30 : vector<8x32xf32>
    %c0_10 = arith.constant 0 : index
    %c0_11 = arith.constant 0 : index
    %32 = vector.load %arg5[%c0_10, %c0_11] : memref<32x32xf32, #tpu.memory_space<vmem>>, vector<32x32xf32>
    %cst_12 = arith.constant dense<0.000000e+00> : vector<8x32xf32>
    %33 = tpu.matmul %31, %32, %cst_12 {dimension_numbers = #tpu.dot_dimension_numbers<[1], [0], [0], [1], [0, 0, 1, 1], [], []>} : vector<8x32xf32>, vector<32x32xf32>, vector<8x32xf32> -> vector<8x32xf32>
    %c0_13 = arith.constant 0 : index
    %c0_14 = arith.constant 0 : index
    %34 = vector.load %arg6[%c0_13, %c0_14] : memref<1x32xf32, #tpu.memory_space<vmem>>, vector<1x32xf32>
    %35 = vector.broadcast %34 : vector<1x32xf32> to vector<8x32xf32>
    %36 = arith.addf %33, %35 : vector<8x32xf32>
    %37 = vector.extract_strided_slice %36 {offsets = [0, 0], sizes = [8, 8], strides = [1, 1]} : vector<8x32xf32> to vector<8x8xf32>
    %c0_15 = arith.constant 0 : index
    %c0_16 = arith.constant 0 : index
    %38 = vector.load %arg20[%c0_15, %c0_16] : memref<8x32xf32, #tpu.memory_space<vmem>>, vector<8x8xf32>
    %cst_17 = arith.constant dense<0.000000e+00> : vector<8x8xf32>
    %39 = tpu.matmul %37, %38, %cst_17 {dimension_numbers = #tpu.dot_dimension_numbers<[1], [1], [0], [0], [0, 0, 1, 0], [], []>} : vector<8x8xf32>, vector<8x8xf32>, vector<8x8xf32> -> vector<8x8xf32>
    %cst_18 = arith.constant dense<0xFF800000> : vector<8xf32>
    %40 = vector.multi_reduction <maximumf>, %39, %cst_18 [1] : vector<8x8xf32> to vector<8xf32>
    %41 = vector.shape_cast %40 : vector<8xf32> to vector<8x1xf32>
    %42 = vector.broadcast %41 : vector<8x1xf32> to vector<8x8xf32>
    %43 = arith.subf %39, %42 : vector<8x8xf32>
    %44 = math.exp %43 : vector<8x8xf32>
    %cst_19 = arith.constant dense<0.000000e+00> : vector<8xf32>
    %45 = vector.multi_reduction <add>, %44, %cst_19 [1] : vector<8x8xf32> to vector<8xf32>
    %46 = vector.shape_cast %45 : vector<8xf32> to vector<8x1xf32>
    %47 = tpu.reciprocal %46 {approx = true} : vector<8x1xf32> -> vector<8x1xf32>
    %c0_20 = arith.constant 0 : index
    %c0_21 = arith.constant 0 : index
    %48 = vector.load %arg21[%c0_20, %c0_21] : memref<8x32xf32, #tpu.memory_space<vmem>>, vector<8x8xf32>
    %cst_22 = arith.constant dense<0.000000e+00> : vector<8x8xf32>
    %49 = tpu.matmul %44, %48, %cst_22 {dimension_numbers = #tpu.dot_dimension_numbers<[1], [0], [0], [1], [0, 0, 1, 1], [], []>} : vector<8x8xf32>, vector<8x8xf32>, vector<8x8xf32> -> vector<8x8xf32>
    %50 = vector.broadcast %47 : vector<8x1xf32> to vector<8x8xf32>
    %51 = arith.mulf %49, %50 : vector<8x8xf32>
    %c0_23 = arith.constant 0 : index
    %c0_24 = arith.constant 0 : index
    %52 = vector.load %arg22[%c0_23, %c0_24] : memref<8x32xf32, #tpu.memory_space<vmem>>, vector<8x8xf32>
    tpu.vector_store %arg22[%c0_23, %c0_24], %51 {strides = array<i32>} : memref<8x32xf32, #tpu.memory_space<vmem>>, vector<8x8xf32>,
    %53 = vector.extract_strided_slice %36 {offsets = [0, 8], sizes = [8, 8], strides = [1, 1]} : vector<8x32xf32> to vector<8x8xf32>
    %c0_25 = arith.constant 0 : index
    %c8 = arith.constant 8 : index
    %54 = vector.load %arg20[%c0_25, %c8] : memref<8x32xf32, #tpu.memory_space<vmem>>, vector<8x8xf32>
    %cst_26 = arith.constant dense<0.000000e+00> : vector<8x8xf32>
    %55 = tpu.matmul %53, %54, %cst_26 {dimension_numbers = #tpu.dot_dimension_numbers<[1], [1], [0], [0], [0, 0, 1, 0], [], []>} : vector<8x8xf32>, vector<8x8xf32>, vector<8x8xf32> -> vector<8x8xf32>
    %cst_27 = arith.constant dense<0xFF800000> : vector<8xf32>
    %56 = vector.multi_reduction <maximumf>, %55, %cst_27 [1] : vector<8x8xf32> to vector<8xf32>
    %57 = vector.shape_cast %56 : vector<8xf32> to vector<8x1xf32>
    %58 = vector.broadcast %57 : vector<8x1xf32> to vector<8x8xf32>
    %59 = arith.subf %55, %58 : vector<8x8xf32>
    %60 = math.exp %59 : vector<8x8xf32>
    %cst_28 = arith.constant dense<0.000000e+00> : vector<8xf32>
    %61 = vector.multi_reduction <add>, %60, %cst_28 [1] : vector<8x8xf32> to vector<8xf32>
    %62 = vector.shape_cast %61 : vector<8xf32> to vector<8x1xf32>
    %63 = tpu.reciprocal %62 {approx = true} : vector<8x1xf32> -> vector<8x1xf32>
    %c0_29 = arith.constant 0 : index
    %c8_30 = arith.constant 8 : index
    %64 = vector.load %arg21[%c0_29, %c8_30] : memref<8x32xf32, #tpu.memory_space<vmem>>, vector<8x8xf32>
    %cst_31 = arith.constant dense<0.000000e+00> : vector<8x8xf32>
    %65 = tpu.matmul %60, %64, %cst_31 {dimension_numbers = #tpu.dot_dimension_numbers<[1], [0], [0], [1], [0, 0, 1, 1], [], []>} : vector<8x8xf32>, vector<8x8xf32>, vector<8x8xf32> -> vector<8x8xf32>
    %66 = vector.broadcast %63 : vector<8x1xf32> to vector<8x8xf32>
    %67 = arith.mulf %65, %66 : vector<8x8xf32>
    %c0_32 = arith.constant 0 : index
    %c8_33 = arith.constant 8 : index
    %68 = vector.load %arg22[%c0_32, %c8_33] : memref<8x32xf32, #tpu.memory_space<vmem>>, vector<8x8xf32>
    tpu.vector_store %arg22[%c0_32, %c8_33], %67 {strides = array<i32>} : memref<8x32xf32, #tpu.memory_space<vmem>>, vector<8x8xf32>,
    %69 = vector.extract_strided_slice %36 {offsets = [0, 16], sizes = [8, 8], strides = [1, 1]} : vector<8x32xf32> to vector<8x8xf32>
    %c0_34 = arith.constant 0 : index
    %c16 = arith.constant 16 : index
    %70 = vector.load %arg20[%c0_34, %c16] : memref<8x32xf32, #tpu.memory_space<vmem>>, vector<8x8xf32>
    %cst_35 = arith.constant dense<0.000000e+00> : vector<8x8xf32>
    %71 = tpu.matmul %69, %70, %cst_35 {dimension_numbers = #tpu.dot_dimension_numbers<[1], [1], [0], [0], [0, 0, 1, 0], [], []>} : vector<8x8xf32>, vector<8x8xf32>, vector<8x8xf32> -> vector<8x8xf32>
    %cst_36 = arith.constant dense<0xFF800000> : vector<8xf32>
    %72 = vector.multi_reduction <maximumf>, %71, %cst_36 [1] : vector<8x8xf32> to vector<8xf32>
    %73 = vector.shape_cast %72 : vector<8xf32> to vector<8x1xf32>
    %74 = vector.broadcast %73 : vector<8x1xf32> to vector<8x8xf32>
    %75 = arith.subf %71, %74 : vector<8x8xf32>
    %76 = math.exp %75 : vector<8x8xf32>
    %cst_37 = arith.constant dense<0.000000e+00> : vector<8xf32>
    %77 = vector.multi_reduction <add>, %76, %cst_37 [1] : vector<8x8xf32> to vector<8xf32>
    %78 = vector.shape_cast %77 : vector<8xf32> to vector<8x1xf32>
    %79 = tpu.reciprocal %78 {approx = true} : vector<8x1xf32> -> vector<8x1xf32>
    %c0_38 = arith.constant 0 : index
    %c16_39 = arith.constant 16 : index
    %80 = vector.load %arg21[%c0_38, %c16_39] : memref<8x32xf32, #tpu.memory_space<vmem>>, vector<8x8xf32>
    %cst_40 = arith.constant dense<0.000000e+00> : vector<8x8xf32>
    %81 = tpu.matmul %76, %80, %cst_40 {dimension_numbers = #tpu.dot_dimension_numbers<[1], [0], [0], [1], [0, 0, 1, 1], [], []>} : vector<8x8xf32>, vector<8x8xf32>, vector<8x8xf32> -> vector<8x8xf32>
    %82 = vector.broadcast %79 : vector<8x1xf32> to vector<8x8xf32>
    %83 = arith.mulf %81, %82 : vector<8x8xf32>
    %c0_41 = arith.constant 0 : index
    %c16_42 = arith.constant 16 : index
    %84 = vector.load %arg22[%c0_41, %c16_42] : memref<8x32xf32, #tpu.memory_space<vmem>>, vector<8x8xf32>
    tpu.vector_store %arg22[%c0_41, %c16_42], %83 {strides = array<i32>} : memref<8x32xf32, #tpu.memory_space<vmem>>, vector<8x8xf32>,
    %85 = vector.extract_strided_slice %36 {offsets = [0, 24], sizes = [8, 8], strides = [1, 1]} : vector<8x32xf32> to vector<8x8xf32>
    %c0_43 = arith.constant 0 : index
    %c24 = arith.constant 24 : index
    %86 = vector.load %arg20[%c0_43, %c24] : memref<8x32xf32, #tpu.memory_space<vmem>>, vector<8x8xf32>
    %cst_44 = arith.constant dense<0.000000e+00> : vector<8x8xf32>
    %87 = tpu.matmul %85, %86, %cst_44 {dimension_numbers = #tpu.dot_dimension_numbers<[1], [1], [0], [0], [0, 0, 1, 0], [], []>} : vector<8x8xf32>, vector<8x8xf32>, vector<8x8xf32> -> vector<8x8xf32>
    %cst_45 = arith.constant dense<0xFF800000> : vector<8xf32>
    %88 = vector.multi_reduction <maximumf>, %87, %cst_45 [1] : vector<8x8xf32> to vector<8xf32>
    %89 = vector.shape_cast %88 : vector<8xf32> to vector<8x1xf32>
    %90 = vector.broadcast %89 : vector<8x1xf32> to vector<8x8xf32>
    %91 = arith.subf %87, %90 : vector<8x8xf32>
    %92 = math.exp %91 : vector<8x8xf32>
    %cst_46 = arith.constant dense<0.000000e+00> : vector<8xf32>
    %93 = vector.multi_reduction <add>, %92, %cst_46 [1] : vector<8x8xf32> to vector<8xf32>
    %94 = vector.shape_cast %93 : vector<8xf32> to vector<8x1xf32>
    %95 = tpu.reciprocal %94 {approx = true} : vector<8x1xf32> -> vector<8x1xf32>
    %c0_47 = arith.constant 0 : index
    %c24_48 = arith.constant 24 : index
    %96 = vector.load %arg21[%c0_47, %c24_48] : memref<8x32xf32, #tpu.memory_space<vmem>>, vector<8x8xf32>
    %cst_49 = arith.constant dense<0.000000e+00> : vector<8x8xf32>
    %97 = tpu.matmul %92, %96, %cst_49 {dimension_numbers = #tpu.dot_dimension_numbers<[1], [0], [0], [1], [0, 0, 1, 1], [], []>} : vector<8x8xf32>, vector<8x8xf32>, vector<8x8xf32> -> vector<8x8xf32>
    %98 = vector.broadcast %95 : vector<8x1xf32> to vector<8x8xf32>
    %99 = arith.mulf %97, %98 : vector<8x8xf32>
    %c0_50 = arith.constant 0 : index
    %c24_51 = arith.constant 24 : index
    %100 = vector.load %arg22[%c0_50, %c24_51] : memref<8x32xf32, #tpu.memory_space<vmem>>, vector<8x8xf32>
    tpu.vector_store %arg22[%c0_50, %c24_51], %99 {strides = array<i32>} : memref<8x32xf32, #tpu.memory_space<vmem>>, vector<8x8xf32>,
    %c0_52 = arith.constant 0 : index
    %c0_53 = arith.constant 0 : index
    %101 = vector.load %arg22[%c0_52, %c0_53] : memref<8x32xf32, #tpu.memory_space<vmem>>, vector<8x32xf32>
    %c0_54 = arith.constant 0 : index
    %c0_55 = arith.constant 0 : index
    %102 = vector.load %arg11[%c0_54, %c0_55] : memref<32x32xf32, #tpu.memory_space<vmem>>, vector<32x32xf32>
    %cst_56 = arith.constant dense<0.000000e+00> : vector<8x32xf32>
    %103 = tpu.matmul %101, %102, %cst_56 {dimension_numbers = #tpu.dot_dimension_numbers<[1], [0], [0], [1], [0, 0, 1, 1], [], []>} : vector<8x32xf32>, vector<32x32xf32>, vector<8x32xf32> -> vector<8x32xf32>
    %c0_57 = arith.constant 0 : index
    %c0_58 = arith.constant 0 : index
    %104 = vector.load %arg12[%c0_57, %c0_58] : memref<1x32xf32, #tpu.memory_space<vmem>>, vector<1x32xf32>
    %105 = vector.broadcast %104 : vector<1x32xf32> to vector<8x32xf32>
    %106 = arith.addf %103, %105 : vector<8x32xf32>
    %107 = arith.addf %31, %106 : vector<8x32xf32>
    %cst_59 = arith.constant dense<0.000000e+00> : vector<8xf32>
    %108 = vector.multi_reduction <add>, %107, %cst_59 [1] : vector<8x32xf32> to vector<8xf32>
    %109 = vector.shape_cast %108 : vector<8xf32> to vector<8x1xf32>
    %cst_60 = arith.constant 3.200000e+01 : f32
    %110 = vector.broadcast %cst_60 : f32 to vector<8x1xf32>
    %111 = arith.divf %109, %110 : vector<8x1xf32>
    %112 = vector.broadcast %111 : vector<8x1xf32> to vector<8x32xf32>
    %113 = arith.subf %107, %112 : vector<8x32xf32>
    %114 = arith.mulf %113, %113 : vector<8x32xf32>
    %cst_61 = arith.constant dense<0.000000e+00> : vector<8xf32>
    %115 = vector.multi_reduction <add>, %114, %cst_61 [1] : vector<8x32xf32> to vector<8xf32>
    %116 = vector.shape_cast %115 : vector<8xf32> to vector<8x1xf32>
    %cst_62 = arith.constant 3.200000e+01 : f32
    %117 = vector.broadcast %cst_62 : f32 to vector<8x1xf32>
    %118 = arith.divf %116, %117 : vector<8x1xf32>
    %119 = vector.broadcast %111 : vector<8x1xf32> to vector<8x32xf32>
    %120 = arith.subf %107, %119 : vector<8x32xf32>
    %cst_63 = arith.constant 9.99999974E-6 : f32
    %121 = vector.broadcast %cst_63 : f32 to vector<8x1xf32>
    %122 = arith.addf %118, %121 : vector<8x1xf32>
    %123 = math.rsqrt %122 : vector<8x1xf32>
    %124 = vector.broadcast %123 : vector<8x1xf32> to vector<8x32xf32>
    %125 = arith.mulf %120, %124 : vector<8x32xf32>
    %c0_64 = arith.constant 0 : index
    %c0_65 = arith.constant 0 : index
    %126 = vector.load %arg13[%c0_64, %c0_65] : memref<1x32xf32, #tpu.memory_space<vmem>>, vector<1x32xf32>
    %127 = vector.broadcast %126 : vector<1x32xf32> to vector<8x32xf32>
    %128 = arith.mulf %125, %127 : vector<8x32xf32>
    %c0_66 = arith.constant 0 : index
    %c0_67 = arith.constant 0 : index
    %129 = vector.load %arg14[%c0_66, %c0_67] : memref<1x32xf32, #tpu.memory_space<vmem>>, vector<1x32xf32>
    %130 = vector.broadcast %129 : vector<1x32xf32> to vector<8x32xf32>
    %131 = arith.addf %128, %130 : vector<8x32xf32>
    %c0_68 = arith.constant 0 : index
    %c0_69 = arith.constant 0 : index
    %132 = vector.load %arg15[%c0_68, %c0_69] : memref<32x64xf32, #tpu.memory_space<vmem>>, vector<32x64xf32>
    %cst_70 = arith.constant dense<0.000000e+00> : vector<8x64xf32>
    %133 = tpu.matmul %131, %132, %cst_70 {dimension_numbers = #tpu.dot_dimension_numbers<[1], [0], [0], [1], [0, 0, 1, 1], [], []>} : vector<8x32xf32>, vector<32x64xf32>, vector<8x64xf32> -> vector<8x64xf32>
    %c0_71 = arith.constant 0 : index
    %c0_72 = arith.constant 0 : index
    %134 = vector.load %arg16[%c0_71, %c0_72] : memref<1x64xf32, #tpu.memory_space<vmem>>, vector<1x64xf32>
    %135 = vector.broadcast %134 : vector<1x64xf32> to vector<8x64xf32>
    %136 = arith.addf %133, %135 : vector<8x64xf32>
    %cst_73 = arith.constant 0.000000e+00 : f32
    %137 = vector.broadcast %cst_73 : f32 to vector<8x64xf32>
    %138 = arith.maximumf %136, %137 : vector<8x64xf32>
    %c0_74 = arith.constant 0 : index
    %c0_75 = arith.constant 0 : index
    %139 = vector.load %arg17[%c0_74, %c0_75] : memref<64x32xf32, #tpu.memory_space<vmem>>, vector<64x32xf32>
    %cst_76 = arith.constant dense<0.000000e+00> : vector<8x32xf32>
    %140 = tpu.matmul %138, %139, %cst_76 {dimension_numbers = #tpu.dot_dimension_numbers<[1], [0], [0], [1], [0, 0, 1, 1], [], []>} : vector<8x64xf32>, vector<64x32xf32>, vector<8x32xf32> -> vector<8x32xf32>
    %c0_77 = arith.constant 0 : index
    %c0_78 = arith.constant 0 : index
    %141 = vector.load %arg18[%c0_77, %c0_78] : memref<1x32xf32, #tpu.memory_space<vmem>>, vector<1x32xf32>
    %142 = vector.broadcast %141 : vector<1x32xf32> to vector<8x32xf32>
    %143 = arith.addf %140, %142 : vector<8x32xf32>
    %144 = arith.addf %131, %143 : vector<8x32xf32>
    %c0_79 = arith.constant 0 : index
    %c0_80 = arith.constant 0 : index
    %c0_81 = arith.constant 0 : index
    %145 = vector.load %arg19[%c0_79, %c0_80, %c0_81] : memref<1x8x32xf32, #tpu.memory_space<vmem>>, vector<1x8x32xf32>
    %146 = vector.shape_cast %145 : vector<1x8x32xf32> to vector<8x32xf32>
    %147 = vector.shape_cast %144 : vector<8x32xf32> to vector<1x8x32xf32>
    tpu.vector_store %arg19[%c0_79, %c0_80, %c0_81], %147 {strides = array<i32>} : memref<1x8x32xf32, #tpu.memory_space<vmem>>, vector<1x8x32xf32>,
    return
  }
  func.func @transform_0(%arg0: i32, %arg1: i32) -> (i32, i32, i32) {
    %c0_i32 = arith.constant 0 : i32
    %c0_i32_0 = arith.constant 0 : i32
    %c0_i32_1 = arith.constant 0 : i32
    return %arg0, %c0_i32, %c0_i32_0 : i32, i32, i32
  }
  func.func @transform_1(%arg0: i32, %arg1: i32) -> (i32, i32) {
    %c0_i32 = arith.constant 0 : i32
    %c0_i32_0 = arith.constant 0 : i32
    %c0_i32_1 = arith.constant 0 : i32
    return %c0_i32, %c0_i32_0 : i32, i32
  }
  func.func @transform_2(%arg0: i32, %arg1: i32) -> (i32, i32) {
    %c0_i32 = arith.constant 0 : i32
    %c0_i32_0 = arith.constant 0 : i32
    %c0_i32_1 = arith.constant 0 : i32
    return %c0_i32, %c0_i32_0 : i32, i32
  }
  func.func @transform_3(%arg0: i32, %arg1: i32) -> (i32, i32) {
    %c0_i32 = arith.constant 0 : i32
    %c0_i32_0 = arith.constant 0 : i32
    %c0_i32_1 = arith.constant 0 : i32
    return %c0_i32, %c0_i32_0 : i32, i32
  }
  func.func @transform_4(%arg0: i32, %arg1: i32) -> (i32, i32) {
    %c0_i32 = arith.constant 0 : i32
    %c0_i32_0 = arith.constant 0 : i32
    %c0_i32_1 = arith.constant 0 : i32
    return %c0_i32, %c0_i32_0 : i32, i32
  }
  func.func @transform_5(%arg0: i32, %arg1: i32) -> (i32, i32) {
    %c0_i32 = arith.constant 0 : i32
    %c0_i32_0 = arith.constant 0 : i32
    %c0_i32_1 = arith.constant 0 : i32
    return %c0_i32, %c0_i32_0 : i32, i32
  }
  func.func @transform_6(%arg0: i32, %arg1: i32) -> (i32, i32) {
    %c0_i32 = arith.constant 0 : i32
    %c0_i32_0 = arith.constant 0 : i32
    %c0_i32_1 = arith.constant 0 : i32
    return %c0_i32, %c0_i32_0 : i32, i32
  }
  func.func @transform_7(%arg0: i32, %arg1: i32) -> (i32, i32) {
    %c0_i32 = arith.constant 0 : i32
    %c0_i32_0 = arith.constant 0 : i32
    %c0_i32_1 = arith.constant 0 : i32
    return %c0_i32, %c0_i32_0 : i32, i32
  }
  func.func @transform_8(%arg0: i32, %arg1: i32) -> (i32, i32) {
    %c0_i32 = arith.constant 0 : i32
    %c0_i32_0 = arith.constant 0 : i32
    %c0_i32_1 = arith.constant 0 : i32
    return %c0_i32, %c0_i32_0 : i32, i32
  }
  func.func @transform_9(%arg0: i32, %arg1: i32) -> (i32, i32) {
    %c0_i32 = arith.constant 0 : i32
    %c0_i32_0 = arith.constant 0 : i32
    %c0_i32_1 = arith.constant 0 : i32
    return %c0_i32, %c0_i32_0 : i32, i32
  }
  func.func @transform_10(%arg0: i32, %arg1: i32) -> (i32, i32) {
    %c0_i32 = arith.constant 0 : i32
    %c0_i32_0 = arith.constant 0 : i32
    %c0_i32_1 = arith.constant 0 : i32
    return %c0_i32, %c0_i32_0 : i32, i32
  }
  func.func @transform_11(%arg0: i32, %arg1: i32) -> (i32, i32) {
    %c0_i32 = arith.constant 0 : i32
    %c0_i32_0 = arith.constant 0 : i32
    %c0_i32_1 = arith.constant 0 : i32
    return %c0_i32, %c0_i32_0 : i32, i32
  }
  func.func @transform_12(%arg0: i32, %arg1: i32) -> (i32, i32) {
    %c0_i32 = arith.constant 0 : i32
    %c0_i32_0 = arith.constant 0 : i32
    %c0_i32_1 = arith.constant 0 : i32
    return %c0_i32, %c0_i32_0 : i32, i32
  }
  func.func @transform_13(%arg0: i32, %arg1: i32) -> (i32, i32) {
    %c0_i32 = arith.constant 0 : i32
    %c0_i32_0 = arith.constant 0 : i32
    %c0_i32_1 = arith.constant 0 : i32
    return %c0_i32, %c0_i32_0 : i32, i32
  }
  func.func @transform_14(%arg0: i32, %arg1: i32) -> (i32, i32) {
    %c0_i32 = arith.constant 0 : i32
    %c0_i32_0 = arith.constant 0 : i32
    %c0_i32_1 = arith.constant 0 : i32
    return %c0_i32, %c0_i32_0 : i32, i32
  }
  func.func @transform_15(%arg0: i32, %arg1: i32) -> (i32, i32) {
    %c0_i32 = arith.constant 0 : i32
    %c0_i32_0 = arith.constant 0 : i32
    %c0_i32_1 = arith.constant 0 : i32
    return %c0_i32, %c0_i32_0 : i32, i32
  }
  func.func @transform_16(%arg0: i32, %arg1: i32) -> (i32, i32) {
    %c0_i32 = arith.constant 0 : i32
    %c0_i32_0 = arith.constant 0 : i32
    %c0_i32_1 = arith.constant 0 : i32
    return %c0_i32, %c0_i32_0 : i32, i32
  }
  func.func @transform_17(%arg0: i32, %arg1: i32) -> (i32, i32, i32) {
    %c0_i32 = arith.constant 0 : i32
    %c0_i32_0 = arith.constant 0 : i32
    return %arg0, %arg1, %c0_i32 : i32, i32, i32
  }
}

</mosaic_0001>

<llo_original>
// kernel: tpu_custom_call.1
$region0: #{tpu_custom_call.1}
  #allocation0 [shape = 'u32[]', space=smem, size = 0x4, offset = 0x4, fixed_abs, tag = 'smem constant byte address 0x4 - core index']
  #allocation1 [shape = 'u32[144,128]{1,0:T(1,128)}', space=vmem, size = 0x12000, scoped, tag = 'internal scratch']
  #allocation2 [shape = 'f32[8,32]{1,0:T(8,128)}', space=vmem, size = 0x1000, scoped, tag = 'scratch operand']
  #allocation3 [shape = 'f32[8,32]{1,0:T(8,128)}', space=vmem, size = 0x1000, scoped, tag = 'scratch operand']
  #allocation4 [shape = 'f32[8,32]{1,0:T(8,128)}', space=vmem, size = 0x1000, scoped, tag = 'scratch operand']
  %s0 = inlined_call_operand.hbm [shape: f32[2,8,32], index: 0, kind: input, shape index: {}]
  %s1 = inlined_call_operand.hbm [shape: f32[1,32], index: 1, kind: input, shape index: {}]
  %s2 = inlined_call_operand.hbm [shape: f32[1,32], index: 2, kind: input, shape index: {}]
  %s3 = inlined_call_operand.hbm [shape: f32[32,32], index: 3, kind: input, shape index: {}]
  %s4 = inlined_call_operand.hbm [shape: f32[1,32], index: 4, kind: input, shape index: {}]
  %s5 = inlined_call_operand.hbm [shape: f32[32,32], index: 5, kind: input, shape index: {}]
  %s6 = inlined_call_operand.hbm [shape: f32[1,32], index: 6, kind: input, shape index: {}]
  %s7 = inlined_call_operand.hbm [shape: f32[32,32], index: 7, kind: input, shape index: {}]
  %s8 = inlined_call_operand.hbm [shape: f32[1,32], index: 8, kind: input, shape index: {}]
  %s9 = inlined_call_operand.hbm [shape: f32[32,32], index: 9, kind: input, shape index: {}]
  %s10 = inlined_call_operand.hbm [shape: f32[1,32], index: 10, kind: input, shape index: {}]
  %s11 = inlined_call_operand.hbm [shape: f32[1,32], index: 11, kind: input, shape index: {}]
  %s12 = inlined_call_operand.hbm [shape: f32[1,32], index: 12, kind: input, shape index: {}]
  %s13 = inlined_call_operand.hbm [shape: f32[32,64], index: 13, kind: input, shape index: {}]
  %s14 = inlined_call_operand.hbm [shape: f32[1,64], index: 14, kind: input, shape index: {}]
  %s15 = inlined_call_operand.hbm [shape: f32[64,32], index: 15, kind: input, shape index: {}]
  %s16 = inlined_call_operand.hbm [shape: f32[1,32], index: 16, kind: input, shape index: {}]
  %s17 = inlined_call_operand.hbm [shape: f32[2,8,32], index: 17, kind: output, shape index: {}]
  %s18 = sld [smem:[#allocation0]]
  $region173: #{tpu_custom_call.1} parent=0
    _
  %s20 = ssub.s32 1, %s18
  %s21 = scalar_select 0, %s20, %s18
  $region1: #{tpu_custom_call.1} parent=0
    #allocation5 [shape = 'u8[8192]{0}', space=vmem, size = 0x2000, scoped, tag = 'input window, operand 0']
    #allocation6 [shape = 's32[2]{0}', space=sflag, size = 0x8, scoped, tag = 'scoped memory for tpu_custom_call.1']
    #allocation7 [shape = 's32[2]{0}', space=sflag, size = 0x8, scoped, tag = 'scoped memory for tpu_custom_call.1']
    #allocation8 [shape = 'u8[512]{0}', space=vmem, size = 0x400, scoped, tag = 'input window, operand 1, single buffered']
    #allocation9 [shape = 's32[1]{0}', space=sflag, size = 0x4, scoped, tag = 'scoped memory for tpu_custom_call.1']
    #allocation10 [shape = 'u8[512]{0}', space=vmem, size = 0x400, scoped, tag = 'input window, operand 2, single buffered']
    #allocation11 [shape = 'u8[16384]{0}', space=vmem, size = 0x4000, scoped, tag = 'input window, operand 3, single buffered']
    #allocation12 [shape = 's32[1]{0}', space=sflag, size = 0x4, scoped, tag = 'scoped memory for tpu_custom_call.1']
    #allocation13 [shape = 'u8[512]{0}', space=vmem, size = 0x400, scoped, tag = 'input window, operand 4, single buffered']
    #allocation14 [shape = 'u8[16384]{0}', space=vmem, size = 0x4000, scoped, tag = 'input window, operand 5, single buffered']
    #allocation15 [shape = 's32[1]{0}', space=sflag, size = 0x4, scoped, tag = 'scoped memory for tpu_custom_call.1']
    #allocation16 [shape = 'u8[512]{0}', space=vmem, size = 0x400, scoped, tag = 'input window, operand 6, single buffered']
    #allocation17 [shape = 'u8[16384]{0}', space=vmem, size = 0x4000, scoped, tag = 'input window, operand 7, single buffered']
    #allocation18 [shape = 's32[1]{0}', space=sflag, size = 0x4, scoped, tag = 'scoped memory for tpu_custom_call.1']
    #allocation19 [shape = 'u8[512]{0}', space=vmem, size = 0x400, scoped, tag = 'input window, operand 8, single buffered']
    #allocation20 [shape = 'u8[16384]{0}', space=vmem, size = 0x4000, scoped, tag = 'input window, operand 9, single buffered']
    #allocation21 [shape = 's32[1]{0}', space=sflag, size = 0x4, scoped, tag = 'scoped memory for tpu_custom_call.1']
    #allocation22 [shape = 'u8[512]{0}', space=vmem, size = 0x400, scoped, tag = 'input window, operand 10, single buffered']
    #allocation23 [shape = 'u8[512]{0}', space=vmem, size = 0x400, scoped, tag = 'input window, operand 11, single buffered']
    #allocation24 [shape = 's32[1]{0}', space=sflag, size = 0x4, scoped, tag = 'scoped memory for tpu_custom_call.1']
    #allocation25 [shape = 'u8[512]{0}', space=vmem, size = 0x400, scoped, tag = 'input window, operand 12, single buffered']
    #allocation26 [shape = 'u8[16384]{0}', space=vmem, size = 0x4000, scoped, tag = 'input window, operand 13, single buffered']
    #allocation27 [shape = 's32[1]{0}', space=sflag, size = 0x4, scoped, tag = 'scoped memory for tpu_custom_call.1']
    #allocation28 [shape = 'u8[512]{0}', space=vmem, size = 0x400, scoped, tag = 'input window, operand 14, single buffered']
    #allocation29 [shape = 'u8[32768]{0}', space=vmem, size = 0x8000, scoped, tag = 'input window, operand 15, single buffered']
    #allocation30 [shape = 's32[1]{0}', space=sflag, size = 0x4, scoped, tag = 'scoped memory for tpu_custom_call.1']
    #allocation31 [shape = 'u8[512]{0}', space=vmem, size = 0x400, scoped, tag = 'input window, operand 16, single buffered']
    #allocation32 [shape = 'u8[8192]{0}', space=vmem, size = 0x2000, scoped, tag = 'output window, operand 0']
    %22 = vsyncpa [#allocation6], 0
    %s23 = scalar_lea.sflag [#allocation6], 1
    %24 = vsyncpa %s23, 0
    %25 = vsyncpa [#allocation9], 0
    %26 = vsyncpa [#allocation12], 0
    %27 = vsyncpa [#allocation15], 0
    %28 = vsyncpa [#allocation18], 0
    %29 = vsyncpa [#allocation21], 0
    %30 = vsyncpa [#allocation24], 0
    %31 = vsyncpa [#allocation27], 0
    %32 = vsyncpa [#allocation30], 0
    %33 = vsyncpa [#allocation7], 0
    %s34 = scalar_lea.sflag [#allocation7], 1
    %35 = vsyncpa %s34, 0
    loop: start=0, step=1, limit=4
    $region2: #{tpu_custom_call.1} parent=1 // loop_pre_header
      _
    $region3: #{tpu_custom_call.1} parent=1 // loop_header
      %s37 = sphi 0, %s41
      %p38 = scmp.ge.s32.totalorder %s37, 4
      %s44 = sphi 0, %s56
      %s45 = sphi 0, %s52
      %s46 = sphi 0, %s44
      %s47 = sphi 0, %s45
      %s48 = sphi 0, %s46
      %s49 = sphi 0, %s47
      %s59 = sphi 0, %s61
      %s62 = sphi 0, %s59
      %s63 = sphi 0, %s62
      %s79 = sphi 0, %s63
      %s83 = sphi 0, %s83
      %s85 = sphi 0, %s83
      %s86 = sphi 0, %s85
      %s100 = sphi 0, %s86
      %s104 = sphi 0, %s104
      %s106 = sphi 0, %s104
      %s107 = sphi 0, %s106
      %s121 = sphi 0, %s107
      %s125 = sphi 0, %s125
      %s127 = sphi 0, %s125
      %s128 = sphi 0, %s127
      %s142 = sphi 0, %s128
      %s146 = sphi 0, %s146
      %s148 = sphi 0, %s146
      %s149 = sphi 0, %s148
      %s163 = sphi 0, %s149
      %s167 = sphi 0, %s167
      %s169 = sphi 0, %s167
      %s170 = sphi 0, %s169
      %s184 = sphi 0, %s170
      %s188 = sphi 0, %s188
      %s190 = sphi 0, %s188
      %s191 = sphi 0, %s190
      %s205 = sphi 0, %s191
      %s209 = sphi 0, %s209
      %s211 = sphi 0, %s209
      %s212 = sphi 0, %s211
      %s226 = sphi 0, %s212
      %s230 = sphi 0, %s230
      %s232 = sphi 0, %s230
      %s233 = sphi 0, %s232
      %s247 = sphi 0, %s233
      %s251 = sphi 0, %s251
      %s253 = sphi 0, %s251
      %s254 = sphi 0, %s253
      %s268 = sphi 0, %s254
      %s272 = sphi 0, %s272
      %s274 = sphi 0, %s272
      %s275 = sphi 0, %s274
      %s289 = sphi 0, %s275
      %s293 = sphi 0, %s293
      %s295 = sphi 0, %s293
      %s296 = sphi 0, %s295
      %s310 = sphi 0, %s296
      %s314 = sphi 0, %s314
      %s316 = sphi 0, %s314
      %s317 = sphi 0, %s316
      %s331 = sphi 0, %s317
      %s335 = sphi 0, %s335
      %s337 = sphi 0, %s335
      %s338 = sphi 0, %s337
      %s352 = sphi 0, %s338
      %s356 = sphi 0, %s356
      %s358 = sphi 0, %s356
      %s359 = sphi 0, %s358
      %s373 = sphi 0, %s359
      %s377 = sphi 0, %s377
      %s379 = sphi 0, %s377
      %s380 = sphi 0, %s379
      %s394 = sphi 0, %s380
      %s398 = sphi 0, %s398
      %s400 = sphi 0, %s398
      %s401 = sphi 0, %s400
      %s415 = sphi 0, %s401
      %s423 = sphi 0, %s425
      %s426 = sphi 0, %s423
      %s427 = sphi 0, %s426
      %s443 = sphi 0, %s427
    $region4: #{tpu_custom_call.1} parent=1 // loop_header_branch
      %40 = sbr.rel (%p38) target = $region8
    $region5: #{tpu_custom_call.1} parent=1 // loop_body
      %s42 = ssub.s32 %s37, 1
      %s43 = ssub.s32 %s37, 2
      %s50 = sadd.s32 1, %s45
      %p51 = scmp.ge.s32.totalorder %s50, 1
      %s52 = scalar_select %p51, 0, %s50
      %s53 = sadd.s32 1, %s44
      %s54 = scalar_select %p51, %s53, %s44
      %p55 = scmp.ge.s32.totalorder %s54, 2
      %s56 = scalar_select %p55, 0, %s54
      %s57 = ssub.s32 %s44, %s56
      %p58 = scmp.eq.s32.totalorder %s57, 0
      %s60 = sadd.s32 %s59, 1
      %s61 = scalar_select %p58, %s59, %s60
      %p64 = pneg %p58
      %p65 = scmp.eq.s32.totalorder %s37, 1
      %p66 = por %p64, %p65
      %p67 = scmp.ne.s32.totalorder %s59, %s62
      %p68 = scmp.eq.s32.totalorder %s37, 0
      %p69 = por %p67, %p68
      %p70 = scmp.ne.s32.totalorder %s59, %s62
      %p71 = scmp.eq.s32.totalorder %s42, 1
      %p72 = por %p70, %p71
      %p73 = scmp.ne.s32.totalorder %s62, %s63
      %p74 = scmp.eq.s32.totalorder %s42, 0
      %p75 = por %p73, %p74
      %p76 = scmp.ne.s32.totalorder %s62, %s63
      %p77 = scmp.eq.s32.totalorder %s43, 1
      %p78 = por %p76, %p77
      %p80 = scmp.ne.s32.totalorder %s63, %s79
      %p81 = scmp.eq.s32.totalorder %s43, 0
      %p82 = por %p80, %p81
      %s84 = sadd.s32 %s83, 1
      %p87 = scmp.eq.s32.totalorder %s37, 1
      %p88 = scmp.ne.s32.totalorder %s83, %s85
      %p89 = scmp.eq.s32.totalorder %s37, 0
      %p90 = por %p88, %p89
      %p91 = scmp.ne.s32.totalorder %s83, %s85
      %p92 = scmp.eq.s32.totalorder %s42, 1
      %p93 = por %p91, %p92
      %p94 = scmp.ne.s32.totalorder %s85, %s86
      %p95 = scmp.eq.s32.totalorder %s42, 0
      %p96 = por %p94, %p95
      %p97 = scmp.ne.s32.totalorder %s85, %s86
      %p98 = scmp.eq.s32.totalorder %s43, 1
      %p99 = por %p97, %p98
      %p101 = scmp.ne.s32.totalorder %s86, %s100
      %p102 = scmp.eq.s32.totalorder %s43, 0
      %p103 = por %p101, %p102
      %s105 = sadd.s32 %s104, 1
      %p108 = scmp.eq.s32.totalorder %s37, 1
      %p109 = scmp.ne.s32.totalorder %s104, %s106
      %p110 = scmp.eq.s32.totalorder %s37, 0
      %p111 = por %p109, %p110
      %p112 = scmp.ne.s32.totalorder %s104, %s106
      %p113 = scmp.eq.s32.totalorder %s42, 1
      %p114 = por %p112, %p113
      %p115 = scmp.ne.s32.totalorder %s106, %s107
      %p116 = scmp.eq.s32.totalorder %s42, 0
      %p117 = por %p115, %p116
      %p118 = scmp.ne.s32.totalorder %s106, %s107
      %p119 = scmp.eq.s32.totalorder %s43, 1
      %p120 = por %p118, %p119
      %p122 = scmp.ne.s32.totalorder %s107, %s121
      %p123 = scmp.eq.s32.totalorder %s43, 0
      %p124 = por %p122, %p123
      %s126 = sadd.s32 %s125, 1
      %p129 = scmp.eq.s32.totalorder %s37, 1
      %p130 = scmp.ne.s32.totalorder %s125, %s127
      %p131 = scmp.eq.s32.totalorder %s37, 0
      %p132 = por %p130, %p131
      %p133 = scmp.ne.s32.totalorder %s125, %s127
      %p134 = scmp.eq.s32.totalorder %s42, 1
      %p135 = por %p133, %p134
      %p136 = scmp.ne.s32.totalorder %s127, %s128
      %p137 = scmp.eq.s32.totalorder %s42, 0
      %p138 = por %p136, %p137
      %p139 = scmp.ne.s32.totalorder %s127, %s128
      %p140 = scmp.eq.s32.totalorder %s43, 1
      %p141 = por %p139, %p140
      %p143 = scmp.ne.s32.totalorder %s128, %s142
      %p144 = scmp.eq.s32.totalorder %s43, 0
      %p145 = por %p143, %p144
      %s147 = sadd.s32 %s146, 1
      %p150 = scmp.eq.s32.totalorder %s37, 1
      %p151 = scmp.ne.s32.totalorder %s146, %s148
      %p152 = scmp.eq.s32.totalorder %s37, 0
      %p153 = por %p151, %p152
      %p154 = scmp.ne.s32.totalorder %s146, %s148
      %p155 = scmp.eq.s32.totalorder %s42, 1
      %p156 = por %p154, %p155
      %p157 = scmp.ne.s32.totalorder %s148, %s149
      %p158 = scmp.eq.s32.totalorder %s42, 0
      %p159 = por %p157, %p158
      %p160 = scmp.ne.s32.totalorder %s148, %s149
      %p161 = scmp.eq.s32.totalorder %s43, 1
      %p162 = por %p160, %p161
      %p164 = scmp.ne.s32.totalorder %s149, %s163
      %p165 = scmp.eq.s32.totalorder %s43, 0
      %p166 = por %p164, %p165
      %s168 = sadd.s32 %s167, 1
      %p171 = scmp.eq.s32.totalorder %s37, 1
      %p172 = scmp.ne.s32.totalorder %s167, %s169
      %p173 = scmp.eq.s32.totalorder %s37, 0
      %p174 = por %p172, %p173
      %p175 = scmp.ne.s32.totalorder %s167, %s169
      %p176 = scmp.eq.s32.totalorder %s42, 1
      %p177 = por %p175, %p176
      %p178 = scmp.ne.s32.totalorder %s169, %s170
      %p179 = scmp.eq.s32.totalorder %s42, 0
      %p180 = por %p178, %p179
      %p181 = scmp.ne.s32.totalorder %s169, %s170
      %p182 = scmp.eq.s32.totalorder %s43, 1
      %p183 = por %p181, %p182
      %p185 = scmp.ne.s32.totalorder %s170, %s184
      %p186 = scmp.eq.s32.totalorder %s43, 0
      %p187 = por %p185, %p186
      %s189 = sadd.s32 %s188, 1
      %p192 = scmp.eq.s32.totalorder %s37, 1
      %p193 = scmp.ne.s32.totalorder %s188, %s190
      %p194 = scmp.eq.s32.totalorder %s37, 0
      %p195 = por %p193, %p194
      %p196 = scmp.ne.s32.totalorder %s188, %s190
      %p197 = scmp.eq.s32.totalorder %s42, 1
      %p198 = por %p196, %p197
      %p199 = scmp.ne.s32.totalorder %s190, %s191
      %p200 = scmp.eq.s32.totalorder %s42, 0
      %p201 = por %p199, %p200
      %p202 = scmp.ne.s32.totalorder %s190, %s191
      %p203 = scmp.eq.s32.totalorder %s43, 1
      %p204 = por %p202, %p203
      %p206 = scmp.ne.s32.totalorder %s191, %s205
      %p207 = scmp.eq.s32.totalorder %s43, 0
      %p208 = por %p206, %p207
      %s210 = sadd.s32 %s209, 1
      %p213 = scmp.eq.s32.totalorder %s37, 1
      %p214 = scmp.ne.s32.totalorder %s209, %s211
      %p215 = scmp.eq.s32.totalorder %s37, 0
      %p216 = por %p214, %p215
      %p217 = scmp.ne.s32.totalorder %s209, %s211
      %p218 = scmp.eq.s32.totalorder %s42, 1
      %p219 = por %p217, %p218
      %p220 = scmp.ne.s32.totalorder %s211, %s212
      %p221 = scmp.eq.s32.totalorder %s42, 0
      %p222 = por %p220, %p221
      %p223 = scmp.ne.s32.totalorder %s211, %s212
      %p224 = scmp.eq.s32.totalorder %s43, 1
      %p225 = por %p223, %p224
      %p227 = scmp.ne.s32.totalorder %s212, %s226
      %p228 = scmp.eq.s32.totalorder %s43, 0
      %p229 = por %p227, %p228
      %s231 = sadd.s32 %s230, 1
      %p234 = scmp.eq.s32.totalorder %s37, 1
      %p235 = scmp.ne.s32.totalorder %s230, %s232
      %p236 = scmp.eq.s32.totalorder %s37, 0
      %p237 = por %p235, %p236
      %p238 = scmp.ne.s32.totalorder %s230, %s232
      %p239 = scmp.eq.s32.totalorder %s42, 1
      %p240 = por %p238, %p239
      %p241 = scmp.ne.s32.totalorder %s232, %s233
      %p242 = scmp.eq.s32.totalorder %s42, 0
      %p243 = por %p241, %p242
      %p244 = scmp.ne.s32.totalorder %s232, %s233
      %p245 = scmp.eq.s32.totalorder %s43, 1
      %p246 = por %p244, %p245
      %p248 = scmp.ne.s32.totalorder %s233, %s247
      %p249 = scmp.eq.s32.totalorder %s43, 0
      %p250 = por %p248, %p249
      %s252 = sadd.s32 %s251, 1
      %p255 = scmp.eq.s32.totalorder %s37, 1
      %p256 = scmp.ne.s32.totalorder %s251, %s253
      %p257 = scmp.eq.s32.totalorder %s37, 0
      %p258 = por %p256, %p257
      %p259 = scmp.ne.s32.totalorder %s251, %s253
      %p260 = scmp.eq.s32.totalorder %s42, 1
      %p261 = por %p259, %p260
      %p262 = scmp.ne.s32.totalorder %s253, %s254
      %p263 = scmp.eq.s32.totalorder %s42, 0
      %p264 = por %p262, %p263
      %p265 = scmp.ne.s32.totalorder %s253, %s254
      %p266 = scmp.eq.s32.totalorder %s43, 1
      %p267 = por %p265, %p266
      %p269 = scmp.ne.s32.totalorder %s254, %s268
      %p270 = scmp.eq.s32.totalorder %s43, 0
      %p271 = por %p269, %p270
      %s273 = sadd.s32 %s272, 1
      %p276 = scmp.eq.s32.totalorder %s37, 1
      %p277 = scmp.ne.s32.totalorder %s272, %s274
      %p278 = scmp.eq.s32.totalorder %s37, 0
      %p279 = por %p277, %p278
      %p280 = scmp.ne.s32.totalorder %s272, %s274
      %p281 = scmp.eq.s32.totalorder %s42, 1
      %p282 = por %p280, %p281
      %p283 = scmp.ne.s32.totalorder %s274, %s275
      %p284 = scmp.eq.s32.totalorder %s42, 0
      %p285 = por %p283, %p284
      %p286 = scmp.ne.s32.totalorder %s274, %s275
      %p287 = scmp.eq.s32.totalorder %s43, 1
      %p288 = por %p286, %p287
      %p290 = scmp.ne.s32.totalorder %s275, %s289
      %p291 = scmp.eq.s32.totalorder %s43, 0
      %p292 = por %p290, %p291
      %s294 = sadd.s32 %s293, 1
      %p297 = scmp.eq.s32.totalorder %s37, 1
      %p298 = scmp.ne.s32.totalorder %s293, %s295
      %p299 = scmp.eq.s32.totalorder %s37, 0
      %p300 = por %p298, %p299
      %p301 = scmp.ne.s32.totalorder %s293, %s295
      %p302 = scmp.eq.s32.totalorder %s42, 1
      %p303 = por %p301, %p302
      %p304 = scmp.ne.s32.totalorder %s295, %s296
      %p305 = scmp.eq.s32.totalorder %s42, 0
      %p306 = por %p304, %p305
      %p307 = scmp.ne.s32.totalorder %s295, %s296
      %p308 = scmp.eq.s32.totalorder %s43, 1
      %p309 = por %p307, %p308
      %p311 = scmp.ne.s32.totalorder %s296, %s310
      %p312 = scmp.eq.s32.totalorder %s43, 0
      %p313 = por %p311, %p312
      %s315 = sadd.s32 %s314, 1
      %p318 = scmp.eq.s32.totalorder %s37, 1
      %p319 = scmp.ne.s32.totalorder %s314, %s316
      %p320 = scmp.eq.s32.totalorder %s37, 0
      %p321 = por %p319, %p320
      %p322 = scmp.ne.s32.totalorder %s314, %s316
      %p323 = scmp.eq.s32.totalorder %s42, 1
      %p324 = por %p322, %p323
      %p325 = scmp.ne.s32.totalorder %s316, %s317
      %p326 = scmp.eq.s32.totalorder %s42, 0
      %p327 = por %p325, %p326
      %p328 = scmp.ne.s32.totalorder %s316, %s317
      %p329 = scmp.eq.s32.totalorder %s43, 1
      %p330 = por %p328, %p329
      %p332 = scmp.ne.s32.totalorder %s317, %s331
      %p333 = scmp.eq.s32.totalorder %s43, 0
      %p334 = por %p332, %p333
      %s336 = sadd.s32 %s335, 1
      %p339 = scmp.eq.s32.totalorder %s37, 1
      %p340 = scmp.ne.s32.totalorder %s335, %s337
      %p341 = scmp.eq.s32.totalorder %s37, 0
      %p342 = por %p340, %p341
      %p343 = scmp.ne.s32.totalorder %s335, %s337
      %p344 = scmp.eq.s32.totalorder %s42, 1
      %p345 = por %p343, %p344
      %p346 = scmp.ne.s32.totalorder %s337, %s338
      %p347 = scmp.eq.s32.totalorder %s42, 0
      %p348 = por %p346, %p347
      %p349 = scmp.ne.s32.totalorder %s337, %s338
      %p350 = scmp.eq.s32.totalorder %s43, 1
      %p351 = por %p349, %p350
      %p353 = scmp.ne.s32.totalorder %s338, %s352
      %p354 = scmp.eq.s32.totalorder %s43, 0
      %p355 = por %p353, %p354
      %s357 = sadd.s32 %s356, 1
      %p360 = scmp.eq.s32.totalorder %s37, 1
      %p361 = scmp.ne.s32.totalorder %s356, %s358
      %p362 = scmp.eq.s32.totalorder %s37, 0
      %p363 = por %p361, %p362
      %p364 = scmp.ne.s32.totalorder %s356, %s358
      %p365 = scmp.eq.s32.totalorder %s42, 1
      %p366 = por %p364, %p365
      %p367 = scmp.ne.s32.totalorder %s358, %s359
      %p368 = scmp.eq.s32.totalorder %s42, 0
      %p369 = por %p367, %p368
      %p370 = scmp.ne.s32.totalorder %s358, %s359
      %p371 = scmp.eq.s32.totalorder %s43, 1
      %p372 = por %p370, %p371
      %p374 = scmp.ne.s32.totalorder %s359, %s373
      %p375 = scmp.eq.s32.totalorder %s43, 0
      %p376 = por %p374, %p375
      %s378 = sadd.s32 %s377, 1
      %p381 = scmp.eq.s32.totalorder %s37, 1
      %p382 = scmp.ne.s32.totalorder %s377, %s379
      %p383 = scmp.eq.s32.totalorder %s37, 0
      %p384 = por %p382, %p383
      %p385 = scmp.ne.s32.totalorder %s377, %s379
      %p386 = scmp.eq.s32.totalorder %s42, 1
      %p387 = por %p385, %p386
      %p388 = scmp.ne.s32.totalorder %s379, %s380
      %p389 = scmp.eq.s32.totalorder %s42, 0
      %p390 = por %p388, %p389
      %p391 = scmp.ne.s32.totalorder %s379, %s380
      %p392 = scmp.eq.s32.totalorder %s43, 1
      %p393 = por %p391, %p392
      %p395 = scmp.ne.s32.totalorder %s380, %s394
      %p396 = scmp.eq.s32.totalorder %s43, 0
      %p397 = por %p395, %p396
      %s399 = sadd.s32 %s398, 1
      %p402 = scmp.eq.s32.totalorder %s37, 1
      %p403 = scmp.ne.s32.totalorder %s398, %s400
      %p404 = scmp.eq.s32.totalorder %s37, 0
      %p405 = por %p403, %p404
      %p406 = scmp.ne.s32.totalorder %s398, %s400
      %p407 = scmp.eq.s32.totalorder %s42, 1
      %p408 = por %p406, %p407
      %p409 = scmp.ne.s32.totalorder %s400, %s401
      %p410 = scmp.eq.s32.totalorder %s42, 0
      %p411 = por %p409, %p410
      %p412 = scmp.ne.s32.totalorder %s400, %s401
      %p413 = scmp.eq.s32.totalorder %s43, 1
      %p414 = por %p412, %p413
      %p416 = scmp.ne.s32.totalorder %s401, %s415
      %p417 = scmp.eq.s32.totalorder %s43, 0
      %p418 = por %p416, %p417
      %s419 = ssub.s32 %s44, %s56
      %s420 = ssub.s32 %s45, %s52
      %s421 = sor.u32 %s419, %s420
      %p422 = scmp.eq.s32.totalorder %s421, 0
      %s424 = sadd.s32 %s423, 1
      %s425 = scalar_select %p422, %s423, %s424
      %p428 = pneg %p422
      %p429 = scmp.eq.s32.totalorder %s37, 1
      %p430 = por %p428, %p429
      %p431 = scmp.ne.s32.totalorder %s423, %s426
      %p432 = scmp.eq.s32.totalorder %s37, 0
      %p433 = por %p431, %p432
      %p434 = scmp.ne.s32.totalorder %s423, %s426
      %p435 = scmp.eq.s32.totalorder %s42, 1
      %p436 = por %p434, %p435
      %p437 = scmp.ne.s32.totalorder %s426, %s427
      %p438 = scmp.eq.s32.totalorder %s42, 0
      %p439 = por %p437, %p438
      %p440 = scmp.ne.s32.totalorder %s426, %s427
      %p441 = scmp.eq.s32.totalorder %s43, 1
      %p442 = por %p440, %p441
      %p444 = scmp.ne.s32.totalorder %s427, %s443
      %p445 = scmp.eq.s32.totalorder %s43, 0
      %p446 = por %p444, %p445
      %p447 = scmp.le.s32.totalorder 1, %s37
      %p448 = scmp.lt.s32.totalorder %s37, 3
      %p449 = pnand %p447, %p448
      %p450 = pneg %p449
      // Predicated region
      $region9: #{tpu_custom_call.1} parent=5 // pred_check
        _
      $region10: #{tpu_custom_call.1} parent=5 // pred_check_branch
        %452 = sbr.rel (%p449) target = $region12
      $region11: #{tpu_custom_call.1} parent=5 // pred_region
        %s453 = ssub.s32 %s37, 1
        // Predicated region
        $region13: #{tpu_custom_call.1} parent=11 // pred_check
          %p454 = pneg %p96
        $region14: #{tpu_custom_call.1} parent=11 // pred_check_branch
          %456 = sbr.rel (%p454) target = $region16
        $region15: #{tpu_custom_call.1} parent=11 // pred_region
          %s458 = ssub.s32 16, 16
          %459 = vsyncadd [#allocation9], %s458
          %s461 = sshll.u32 [#allocation8], 4
          %s462 = int_to_ptr.vmem [resolvable:$true] %s461
          %464 = dma.hbm_to_vmem [thread:$0]  %s1, 16, %s462, [#allocation9]
        $region16: #{tpu_custom_call.1} parent=11 // pred_fallthru
          _
        // Predicated region
        $region17: #{tpu_custom_call.1} parent=11 // pred_check
          %p465 = pneg %p117
        $region18: #{tpu_custom_call.1} parent=11 // pred_check_branch
          %467 = sbr.rel (%p465) target = $region20
        $region19: #{tpu_custom_call.1} parent=11 // pred_region
          %s469 = ssub.s32 16, 16
          %470 = vsyncadd [#allocation9], %s469
          %s472 = sshll.u32 [#allocation10], 4
          %s473 = int_to_ptr.vmem [resolvable:$true] %s472
          %475 = dma.hbm_to_vmem [thread:$0]  %s2, 16, %s473, [#allocation9]
        $region20: #{tpu_custom_call.1} parent=11 // pred_fallthru
          _
        // Predicated region
        $region21: #{tpu_custom_call.1} parent=11 // pred_check
          %p476 = pneg %p138
        $region22: #{tpu_custom_call.1} parent=11 // pred_check_branch
          %478 = sbr.rel (%p476) target = $region24
        $region23: #{tpu_custom_call.1} parent=11 // pred_region
          %s480 = ssub.s32 512, 512
          %481 = vsyncadd [#allocation12], %s480
          %s482 = sshll.u32 [#allocation11], 4
          %s483 = int_to_ptr.vmem [resolvable:$true] %s482
          %488 = dma.hbm_to_vmem [thread:$0]  %s3, 512, %s483, [#allocation12], 128, 128, 8
        $region24: #{tpu_custom_call.1} parent=11 // pred_fallthru
          _
        // Predicated region
        $region25: #{tpu_custom_call.1} parent=11 // pred_check
          %p489 = pneg %p159
        $region26: #{tpu_custom_call.1} parent=11 // pred_check_branch
          %491 = sbr.rel (%p489) target = $region28
        $region27: #{tpu_custom_call.1} parent=11 // pred_region
          %s493 = ssub.s32 16, 16
          %494 = vsyncadd [#allocation12], %s493
          %s496 = sshll.u32 [#allocation13], 4
          %s497 = int_to_ptr.vmem [resolvable:$true] %s496
          %499 = dma.hbm_to_vmem [thread:$0]  %s4, 16, %s497, [#allocation12]
        $region28: #{tpu_custom_call.1} parent=11 // pred_fallthru
          _
        // Predicated region
        $region29: #{tpu_custom_call.1} parent=11 // pred_check
          %p500 = pneg %p180
        $region30: #{tpu_custom_call.1} parent=11 // pred_check_branch
          %502 = sbr.rel (%p500) target = $region32
        $region31: #{tpu_custom_call.1} parent=11 // pred_region
          %s504 = ssub.s32 512, 512
          %505 = vsyncadd [#allocation15], %s504
          %s506 = sshll.u32 [#allocation14], 4
          %s507 = int_to_ptr.vmem [resolvable:$true] %s506
          %512 = dma.hbm_to_vmem [thread:$0]  %s5, 512, %s507, [#allocation15], 128, 128, 8
        $region32: #{tpu_custom_call.1} parent=11 // pred_fallthru
          _
        // Predicated region
        $region33: #{tpu_custom_call.1} parent=11 // pred_check
          %p513 = pneg %p201
        $region34: #{tpu_custom_call.1} parent=11 // pred_check_branch
          %515 = sbr.rel (%p513) target = $region36
        $region35: #{tpu_custom_call.1} parent=11 // pred_region
          %s517 = ssub.s32 16, 16
          %518 = vsyncadd [#allocation15], %s517
          %s520 = sshll.u32 [#allocation16], 4
          %s521 = int_to_ptr.vmem [resolvable:$true] %s520
          %523 = dma.hbm_to_vmem [thread:$0]  %s6, 16, %s521, [#allocation15]
        $region36: #{tpu_custom_call.1} parent=11 // pred_fallthru
          _
        // Predicated region
        $region37: #{tpu_custom_call.1} parent=11 // pred_check
          %p524 = pneg %p222
        $region38: #{tpu_custom_call.1} parent=11 // pred_check_branch
          %526 = sbr.rel (%p524) target = $region40
        $region39: #{tpu_custom_call.1} parent=11 // pred_region
          %s528 = ssub.s32 512, 512
          %529 = vsyncadd [#allocation18], %s528
          %s530 = sshll.u32 [#allocation17], 4
          %s531 = int_to_ptr.vmem [resolvable:$true] %s530
          %536 = dma.hbm_to_vmem [thread:$0]  %s7, 512, %s531, [#allocation18], 128, 128, 8
        $region40: #{tpu_custom_call.1} parent=11 // pred_fallthru
          _
        // Predicated region
        $region41: #{tpu_custom_call.1} parent=11 // pred_check
          %p537 = pneg %p243
        $region42: #{tpu_custom_call.1} parent=11 // pred_check_branch
          %539 = sbr.rel (%p537) target = $region44
        $region43: #{tpu_custom_call.1} parent=11 // pred_region
          %s541 = ssub.s32 16, 16
          %542 = vsyncadd [#allocation18], %s541
          %s544 = sshll.u32 [#allocation19], 4
          %s545 = int_to_ptr.vmem [resolvable:$true] %s544
          %547 = dma.hbm_to_vmem [thread:$0]  %s8, 16, %s545, [#allocation18]
        $region44: #{tpu_custom_call.1} parent=11 // pred_fallthru
          _
        // Predicated region
        $region45: #{tpu_custom_call.1} parent=11 // pred_check
          %p548 = pneg %p264
        $region46: #{tpu_custom_call.1} parent=11 // pred_check_branch
          %550 = sbr.rel (%p548) target = $region48
        $region47: #{tpu_custom_call.1} parent=11 // pred_region
          %s552 = ssub.s32 512, 512
          %553 = vsyncadd [#allocation21], %s552
          %s554 = sshll.u32 [#allocation20], 4
          %s555 = int_to_ptr.vmem [resolvable:$true] %s554
          %560 = dma.hbm_to_vmem [thread:$0]  %s9, 512, %s555, [#allocation21], 128, 128, 8
        $region48: #{tpu_custom_call.1} parent=11 // pred_fallthru
          _
        // Predicated region
        $region49: #{tpu_custom_call.1} parent=11 // pred_check
          %p561 = pneg %p285
        $region50: #{tpu_custom_call.1} parent=11 // pred_check_branch
          %563 = sbr.rel (%p561) target = $region52
        $region51: #{tpu_custom_call.1} parent=11 // pred_region
          %s565 = ssub.s32 16, 16
          %566 = vsyncadd [#allocation21], %s565
          %s568 = sshll.u32 [#allocation22], 4
          %s569 = int_to_ptr.vmem [resolvable:$true] %s568
          %571 = dma.hbm_to_vmem [thread:$0]  %s10, 16, %s569, [#allocation21]
        $region52: #{tpu_custom_call.1} parent=11 // pred_fallthru
          _
        // Predicated region
        $region53: #{tpu_custom_call.1} parent=11 // pred_check
          %p572 = pneg %p306
        $region54: #{tpu_custom_call.1} parent=11 // pred_check_branch
          %574 = sbr.rel (%p572) target = $region56
        $region55: #{tpu_custom_call.1} parent=11 // pred_region
          %s576 = ssub.s32 16, 16
          %577 = vsyncadd [#allocation24], %s576
          %s579 = sshll.u32 [#allocation23], 4
          %s580 = int_to_ptr.vmem [resolvable:$true] %s579
          %582 = dma.hbm_to_vmem [thread:$0]  %s11, 16, %s580, [#allocation24]
        $region56: #{tpu_custom_call.1} parent=11 // pred_fallthru
          _
        // Predicated region
        $region57: #{tpu_custom_call.1} parent=11 // pred_check
          %p583 = pneg %p327
        $region58: #{tpu_custom_call.1} parent=11 // pred_check_branch
          %585 = sbr.rel (%p583) target = $region60
        $region59: #{tpu_custom_call.1} parent=11 // pred_region
          %s587 = ssub.s32 16, 16
          %588 = vsyncadd [#allocation24], %s587
          %s590 = sshll.u32 [#allocation25], 4
          %s591 = int_to_ptr.vmem [resolvable:$true] %s590
          %593 = dma.hbm_to_vmem [thread:$0]  %s12, 16, %s591, [#allocation24]
        $region60: #{tpu_custom_call.1} parent=11 // pred_fallthru
          _
        // Predicated region
        $region61: #{tpu_custom_call.1} parent=11 // pred_check
          %p594 = pneg %p348
        $region62: #{tpu_custom_call.1} parent=11 // pred_check_branch
          %596 = sbr.rel (%p594) target = $region64
        $region63: #{tpu_custom_call.1} parent=11 // pred_region
          %s598 = ssub.s32 512, 512
          %599 = vsyncadd [#allocation27], %s598
          %s600 = sshll.u32 [#allocation26], 4
          %s601 = int_to_ptr.vmem [resolvable:$true] %s600
          %606 = dma.hbm_to_vmem [thread:$0]  %s13, 512, %s601, [#allocation27], 128, 128, 8
        $region64: #{tpu_custom_call.1} parent=11 // pred_fallthru
          _
        // Predicated region
        $region65: #{tpu_custom_call.1} parent=11 // pred_check
          %p607 = pneg %p369
        $region66: #{tpu_custom_call.1} parent=11 // pred_check_branch
          %609 = sbr.rel (%p607) target = $region68
        $region67: #{tpu_custom_call.1} parent=11 // pred_region
          %s611 = ssub.s32 16, 16
          %612 = vsyncadd [#allocation27], %s611
          %s614 = sshll.u32 [#allocation28], 4
          %s615 = int_to_ptr.vmem [resolvable:$true] %s614
          %617 = dma.hbm_to_vmem [thread:$0]  %s14, 16, %s615, [#allocation27]
        $region68: #{tpu_custom_call.1} parent=11 // pred_fallthru
          _
        // Predicated region
        $region69: #{tpu_custom_call.1} parent=11 // pred_check
          %p618 = pneg %p390
        $region70: #{tpu_custom_call.1} parent=11 // pred_check_branch
          %620 = sbr.rel (%p618) target = $region72
        $region71: #{tpu_custom_call.1} parent=11 // pred_region
          %s622 = ssub.s32 1024, 1024
          %623 = vsyncadd [#allocation30], %s622
          %s624 = sshll.u32 [#allocation29], 4
          %s625 = int_to_ptr.vmem [resolvable:$true] %s624
          %630 = dma.hbm_to_vmem [thread:$0]  %s15, 1024, %s625, [#allocation30], 128, 128, 8
        $region72: #{tpu_custom_call.1} parent=11 // pred_fallthru
          _
        // Predicated region
        $region73: #{tpu_custom_call.1} parent=11 // pred_check
          %p631 = pneg %p411
        $region74: #{tpu_custom_call.1} parent=11 // pred_check_branch
          %633 = sbr.rel (%p631) target = $region76
        $region75: #{tpu_custom_call.1} parent=11 // pred_region
          %s635 = ssub.s32 16, 16
          %636 = vsyncadd [#allocation30], %s635
          %s638 = sshll.u32 [#allocation31], 4
          %s639 = int_to_ptr.vmem [resolvable:$true] %s638
          %641 = dma.hbm_to_vmem [thread:$0]  %s16, 16, %s639, [#allocation30]
        $region76: #{tpu_custom_call.1} parent=11 // pred_fallthru
          _
      $region12: #{tpu_custom_call.1} parent=5 // pred_fallthru
        _
      %p642 = scmp.lt.s32.totalorder %s37, 2
      // Predicated region
      $region77: #{tpu_custom_call.1} parent=5 // pred_check
        %p643 = pneg %p642
      $region78: #{tpu_custom_call.1} parent=5 // pred_check_branch
        %645 = sbr.rel (%p643) target = $region80
      $region79: #{tpu_custom_call.1} parent=5 // pred_region
        // Predicated region
        $region81: #{tpu_custom_call.1} parent=79 // pred_check
          %p646 = pneg %p69
        $region82: #{tpu_custom_call.1} parent=79 // pred_check_branch
          %648 = sbr.rel (%p646) target = $region84
        $region83: #{tpu_custom_call.1} parent=79 // pred_region
          %s649 = sand.u32 %s59, 1
          %s650 = scalar_lea.sflag [#allocation6], %s649
          %s651 = sand.u32 %s59, 1
          %s652 = smul.addr %s651, 8
          %s653 = scalar_lea.vmem [#allocation5], %s652
          %s655 = ssub.s32 128, 128
          %656 = vsyncadd %s650, %s655
          %s657 = smul.addr %s44, 128
          %s658 = scalar_lea.hbm %s0, %s657
          %s660 = sshll.u32 %s653, 4
          %s661 = int_to_ptr.vmem [resolvable:$true] %s660
          %663 = dma.hbm_to_vmem [thread:$0]  %s658, 128, %s661, %s650
        $region84: #{tpu_custom_call.1} parent=79 // pred_fallthru
          _
      $region80: #{tpu_custom_call.1} parent=5 // pred_fallthru
        _
      %p664 = scmp.le.s32.totalorder 1, %s37
      %p665 = scmp.lt.s32.totalorder %s37, 3
      %p666 = pnand %p664, %p665
      %p667 = pneg %p666
      // Predicated region
      $region85: #{tpu_custom_call.1} parent=5 // pred_check
        _
      $region86: #{tpu_custom_call.1} parent=5 // pred_check_branch
        %669 = sbr.rel (%p666) target = $region88
      $region87: #{tpu_custom_call.1} parent=5 // pred_region
        %s670 = ssub.s32 %s37, 1
        %s671 = sand.u32 %s62, 1
        %s672 = scalar_lea.sflag [#allocation6], %s671
        %s673 = sand.u32 %s62, 1
        %s674 = smul.addr %s673, 8
        %s675 = scalar_lea.vmem [#allocation5], %s674
        // Predicated region
        $region89: #{tpu_custom_call.1} parent=87 // pred_check
          %p676 = pneg %p75
        $region90: #{tpu_custom_call.1} parent=87 // pred_check_branch
          %678 = sbr.rel (%p676) target = $region92
        $region91: #{tpu_custom_call.1} parent=87 // pred_region
          %679 = dma.done %s672, 128
        $region92: #{tpu_custom_call.1} parent=87 // pred_fallthru
          _
        // Predicated region
        $region93: #{tpu_custom_call.1} parent=87 // pred_check
          %p680 = pneg %p96
        $region94: #{tpu_custom_call.1} parent=87 // pred_check_branch
          %682 = sbr.rel (%p680) target = $region96
        $region95: #{tpu_custom_call.1} parent=87 // pred_region
          %683 = dma.done [#allocation9], 16
        $region96: #{tpu_custom_call.1} parent=87 // pred_fallthru
          _
        // Predicated region
        $region97: #{tpu_custom_call.1} parent=87 // pred_check
          %p684 = pneg %p117
        $region98: #{tpu_custom_call.1} parent=87 // pred_check_branch
          %686 = sbr.rel (%p684) target = $region100
        $region99: #{tpu_custom_call.1} parent=87 // pred_region
          %687 = dma.done [#allocation9], 16
        $region100: #{tpu_custom_call.1} parent=87 // pred_fallthru
          _
        // Predicated region
        $region101: #{tpu_custom_call.1} parent=87 // pred_check
          %p688 = pneg %p138
        $region102: #{tpu_custom_call.1} parent=87 // pred_check_branch
          %690 = sbr.rel (%p688) target = $region104
        $region103: #{tpu_custom_call.1} parent=87 // pred_region
          %691 = dma.done [#allocation12], 512
        $region104: #{tpu_custom_call.1} parent=87 // pred_fallthru
          _
        // Predicated region
        $region105: #{tpu_custom_call.1} parent=87 // pred_check
          %p692 = pneg %p159
        $region106: #{tpu_custom_call.1} parent=87 // pred_check_branch
          %694 = sbr.rel (%p692) target = $region108
        $region107: #{tpu_custom_call.1} parent=87 // pred_region
          %695 = dma.done [#allocation12], 16
        $region108: #{tpu_custom_call.1} parent=87 // pred_fallthru
          _
        // Predicated region
        $region109: #{tpu_custom_call.1} parent=87 // pred_check
          %p696 = pneg %p180
        $region110: #{tpu_custom_call.1} parent=87 // pred_check_branch
          %698 = sbr.rel (%p696) target = $region112
        $region111: #{tpu_custom_call.1} parent=87 // pred_region
          %699 = dma.done [#allocation15], 512
        $region112: #{tpu_custom_call.1} parent=87 // pred_fallthru
          _
        // Predicated region
        $region113: #{tpu_custom_call.1} parent=87 // pred_check
          %p700 = pneg %p201
        $region114: #{tpu_custom_call.1} parent=87 // pred_check_branch
          %702 = sbr.rel (%p700) target = $region116
        $region115: #{tpu_custom_call.1} parent=87 // pred_region
          %703 = dma.done [#allocation15], 16
        $region116: #{tpu_custom_call.1} parent=87 // pred_fallthru
          _
        // Predicated region
        $region117: #{tpu_custom_call.1} parent=87 // pred_check
          %p704 = pneg %p222
        $region118: #{tpu_custom_call.1} parent=87 // pred_check_branch
          %706 = sbr.rel (%p704) target = $region120
        $region119: #{tpu_custom_call.1} parent=87 // pred_region
          %707 = dma.done [#allocation18], 512
        $region120: #{tpu_custom_call.1} parent=87 // pred_fallthru
          _
        // Predicated region
        $region121: #{tpu_custom_call.1} parent=87 // pred_check
          %p708 = pneg %p243
        $region122: #{tpu_custom_call.1} parent=87 // pred_check_branch
          %710 = sbr.rel (%p708) target = $region124
        $region123: #{tpu_custom_call.1} parent=87 // pred_region
          %711 = dma.done [#allocation18], 16
        $region124: #{tpu_custom_call.1} parent=87 // pred_fallthru
          _
        // Predicated region
        $region125: #{tpu_custom_call.1} parent=87 // pred_check
          %p712 = pneg %p264
        $region126: #{tpu_custom_call.1} parent=87 // pred_check_branch
          %714 = sbr.rel (%p712) target = $region128
        $region127: #{tpu_custom_call.1} parent=87 // pred_region
          %715 = dma.done [#allocation21], 512
        $region128: #{tpu_custom_call.1} parent=87 // pred_fallthru
          _
        // Predicated region
        $region129: #{tpu_custom_call.1} parent=87 // pred_check
          %p716 = pneg %p285
        $region130: #{tpu_custom_call.1} parent=87 // pred_check_branch
          %718 = sbr.rel (%p716) target = $region132
        $region131: #{tpu_custom_call.1} parent=87 // pred_region
          %719 = dma.done [#allocation21], 16
        $region132: #{tpu_custom_call.1} parent=87 // pred_fallthru
          _
        // Predicated region
        $region133: #{tpu_custom_call.1} parent=87 // pred_check
          %p720 = pneg %p306
        $region134: #{tpu_custom_call.1} parent=87 // pred_check_branch
          %722 = sbr.rel (%p720) target = $region136
        $region135: #{tpu_custom_call.1} parent=87 // pred_region
          %723 = dma.done [#allocation24], 16
        $region136: #{tpu_custom_call.1} parent=87 // pred_fallthru
          _
        // Predicated region
        $region137: #{tpu_custom_call.1} parent=87 // pred_check
          %p724 = pneg %p327
        $region138: #{tpu_custom_call.1} parent=87 // pred_check_branch
          %726 = sbr.rel (%p724) target = $region140
        $region139: #{tpu_custom_call.1} parent=87 // pred_region
          %727 = dma.done [#allocation24], 16
        $region140: #{tpu_custom_call.1} parent=87 // pred_fallthru
          _
        // Predicated region
        $region141: #{tpu_custom_call.1} parent=87 // pred_check
          %p728 = pneg %p348
        $region142: #{tpu_custom_call.1} parent=87 // pred_check_branch
          %730 = sbr.rel (%p728) target = $region144
        $region143: #{tpu_custom_call.1} parent=87 // pred_region
          %731 = dma.done [#allocation27], 512
        $region144: #{tpu_custom_call.1} parent=87 // pred_fallthru
          _
        // Predicated region
        $region145: #{tpu_custom_call.1} parent=87 // pred_check
          %p732 = pneg %p369
        $region146: #{tpu_custom_call.1} parent=87 // pred_check_branch
          %734 = sbr.rel (%p732) target = $region148
        $region147: #{tpu_custom_call.1} parent=87 // pred_region
          %735 = dma.done [#allocation27], 16
        $region148: #{tpu_custom_call.1} parent=87 // pred_fallthru
          _
        // Predicated region
        $region149: #{tpu_custom_call.1} parent=87 // pred_check
          %p736 = pneg %p390
        $region150: #{tpu_custom_call.1} parent=87 // pred_check_branch
          %738 = sbr.rel (%p736) target = $region152
        $region151: #{tpu_custom_call.1} parent=87 // pred_region
          %739 = dma.done [#allocation30], 1024
        $region152: #{tpu_custom_call.1} parent=87 // pred_fallthru
          _
        // Predicated region
        $region153: #{tpu_custom_call.1} parent=87 // pred_check
          %p740 = pneg %p411
        $region154: #{tpu_custom_call.1} parent=87 // pred_check_branch
          %742 = sbr.rel (%p740) target = $region156
        $region155: #{tpu_custom_call.1} parent=87 // pred_region
          %743 = dma.done [#allocation30], 16
        $region156: #{tpu_custom_call.1} parent=87 // pred_fallthru
          _
        %s744 = sand.u32 %s62, 1
        %s745 = scalar_lea.sflag [#allocation6], %s744
        %s746 = sand.u32 %s62, 1
        %s747 = smul.addr %s746, 8
        %s748 = scalar_lea.vmem [#allocation5], %s747
        %p749 = pneg %p75
        %p750 = pneg %p72
        %p751 = pneg %p96
        %p752 = pneg %p93
        %p753 = pneg %p117
        %p754 = pneg %p114
        %p755 = pneg %p138
        %p756 = pneg %p135
        %p757 = pneg %p159
        %p758 = pneg %p156
        %p759 = pneg %p180
        %p760 = pneg %p177
        %p761 = pneg %p201
        %p762 = pneg %p198
        %p763 = pneg %p222
        %p764 = pneg %p219
        %p765 = pneg %p243
        %p766 = pneg %p240
        %p767 = pneg %p264
        %p768 = pneg %p261
        %p769 = pneg %p285
        %p770 = pneg %p282
        %p771 = pneg %p306
        %p772 = pneg %p303
        %p773 = pneg %p327
        %p774 = pneg %p324
        %p775 = pneg %p348
        %p776 = pneg %p345
        %p777 = pneg %p369
        %p778 = pneg %p366
        %p779 = pneg %p390
        %p780 = pneg %p387
        %p781 = pneg %p411
        %p782 = pneg %p408
        %p783 = pneg %p439
        %p784 = pneg %p436
        %s785 = sand.u32 %s426, 1
        %s786 = scalar_lea.sflag [#allocation7], %s785
        %s787 = sand.u32 %s426, 1
        %s788 = smul.addr %s787, 8
        %s789 = scalar_lea.vmem [#allocation32], %s788
        %p790 = scmp.eq.s32.totalorder %s47, 0
        // Predicated region
        $region157: #{tpu_custom_call.1} parent=87 // pred_check
          %p791 = pneg %p790
        $region158: #{tpu_custom_call.1} parent=87 // pred_check_branch
          %793 = sbr.rel (%p791) target = $region160
        $region159: #{tpu_custom_call.1} parent=87 // pred_region
          %v794 = vld [vmem:[%s675] sm:$0xff]
          %vm795 = vcmask 261120
          %v796 = vsel %vm795, %v794, 0.0
          %797 = vadd.xlane.f32.xlu0 %v796
          %v798 = vpop.xlane.xlu0 %797
          %v799 = vrcp.pop 32.0
          %v800 = vmul.f32 %v798, %v799
          %v801 = vsub.f32 %v794, %v800
          %v802 = vmul.f32 %v801, %v801
          %v803 = vsel %vm795, %v802, 0.0
          %804 = vadd.xlane.f32.xlu0 %v803
          %v805 = vpop.xlane.xlu0 %804
          %v806 = vmul.f32 %v805, %v799
          %v807 = vadd.f32 %v806, 1e-05
          %v808 = vrsqrt.pop %v807
          %v809 = vmul.f32 %v801, %v808
          %v810 = vld [vmem:[#allocation8] sm:$0x1]
          %v812 = vlaneseq
          %v813 = vshrl.u32 %v812, 7
          %v814 = vsub.s32 0, %v813
          %v815 = vrot.slane %v810, %v814
          %v817 = vmul.f32 %v809, %v815
          %v818 = vld [vmem:[#allocation10] sm:$0x1]
          %v820 = vlaneseq
          %v821 = vshrl.u32 %v820, 7
          %v822 = vsub.s32 0, %v821
          %v823 = vrot.slane %v818, %v822
          %v825 = vadd.f32 %v817, %v823
          %v826 = vld [vmem:[#allocation14] sm:$0xff]
          %v827 = vld [vmem:[#allocation14 + $0x8] sm:$0xff]
          %v828 = vld [vmem:[#allocation14 + $0x10] sm:$0xff]
          %v829 = vld [vmem:[#allocation14 + $0x18] sm:$0xff]
          %v830 = vld [vmem:[#allocation16] sm:$0x1]
          %v832 = vlaneseq
          %v833 = vshrl.u32 %v832, 7
          %v834 = vsub.s32 0, %v833
          %v835 = vrot.slane %v830, %v834
          %v838 = vsel %vm795, %v825, 0
          %840 = vmatprep.subr.mxu0 0.0
          %841 = vmatpush1.msra.mxu0 %v826
          %842 = vmatprep.subr.mxu0 0.0
          %843 = vmatpush1.msra.mxu0 %v827
          %844 = vmatprep.subr.mxu0 0.0
          %845 = vmatpush1.msra.mxu0 %v828
          %846 = vmatprep.subr.mxu0 0.0
          %847 = vmatpush1.msra.mxu0 %v829
          %848 = vmatprep.subr.mxu0 0.0
          %849 = vmatpush1.msra.mxu0 0.0
          %850 = vmatprep.subr.mxu0 0.0
          %851 = vmatpush1.msra.mxu0 0.0
          %852 = vmatprep.subr.mxu0 0.0
          %853 = vmatpush1.msra.mxu0 0.0
          %854 = vmatprep.subr.mxu0 0.0
          %855 = vmatpush1.msra.mxu0 0.0
          %856 = vmatprep.subr.mxu0 0.0
          %857 = vmatpush1.msra.mxu0 0.0
          %858 = vmatprep.subr.mxu0 0.0
          %859 = vmatpush1.msra.mxu0 0.0
          %860 = vmatprep.subr.mxu0 0.0
          %861 = vmatpush1.msra.mxu0 0.0
          %862 = vmatprep.subr.mxu0 0.0
          %863 = vmatpush1.msra.mxu0 0.0
          %864 = vmatprep.subr.mxu0 0.0
          %865 = vmatpush1.msra.mxu0 0.0
          %866 = vmatprep.subr.mxu0 0.0
          %867 = vmatpush1.msra.mxu0 0.0
          %868 = vmatprep.subr.mxu0 0.0
          %869 = vmatpush1.msra.mxu0 0.0
          %870 = vmatprep.subr.mxu0 0.0
          %871 = vmatpush1.msra.mxu0 0.0
          %872 = vmatprep.subr.mxu0 0.0
          %873 = vmatpush1.msra.mxu0 0.0
          %874 = vmatprep.subr.mxu0 0.0
          %875 = vmatpush1.msra.mxu0 0.0
          %876 = vmatprep.subr.mxu0 0.0
          %877 = vmatpush1.msra.mxu0 0.0
          %878 = vmatprep.subr.mxu0 0.0
          %879 = vmatpush1.msra.mxu0 0.0
          %880 = vmatprep.subr.mxu0 0.0
          %881 = vmatpush1.msra.mxu0 0.0
          %882 = vmatprep.subr.mxu0 0.0
          %883 = vmatpush1.msra.mxu0 0.0
          %884 = vmatprep.subr.mxu0 0.0
          %885 = vmatpush1.msra.mxu0 0.0
          %886 = vmatprep.subr.mxu0 0.0
          %887 = vmatpush1.msra.mxu0 0.0
          %888 = vmatprep.subr.mxu0 0.0
          %889 = vmatpush1.msra.mxu0 0.0
          %890 = vmatprep.subr.mxu0 0.0
          %891 = vmatpush1.msra.mxu0 0.0
          %892 = vmatprep.subr.mxu0 0.0
          %893 = vmatpush1.msra.mxu0 0.0
          %894 = vmatprep.subr.mxu0 0.0
          %895 = vmatpush1.msra.mxu0 0.0
          %896 = vmatprep.subr.mxu0 0.0
          %897 = vmatpush1.msra.mxu0 0.0
          %898 = vmatprep.subr.mxu0 0.0
          %899 = vmatpush1.msra.mxu0 0.0
          %900 = vmatprep.subr.mxu0 0.0
          %901 = vmatpush1.msra.mxu0 0.0
          %902 = vmatprep.subr.mxu0 0.0
          %903 = vmatpush1.msra.mxu0 0.0
          %904 = vmatprep.mubr.f32.mxu0 0.0
          %905 = vmatmul.mubr.f32.gmra.mrb[0].mxu0 %v838
          %v906 = vpop.f32.mrb[0].mxu0
          %v907 = vadd.f32 %v835, %v906
          %v908 = vpop.f32.mrb[0].mxu0
          %909 = vdwg.mxu0
          %910 = vst.msk [vmem:[#allocation2] sm:$0xff] %vm795, %v907
          %v911 = vld [vmem:[#allocation17] sm:$0xff]
          %v912 = vld [vmem:[#allocation17 + $0x8] sm:$0xff]
          %v913 = vld [vmem:[#allocation17 + $0x10] sm:$0xff]
          %v914 = vld [vmem:[#allocation17 + $0x18] sm:$0xff]
          %v915 = vld [vmem:[#allocation19] sm:$0x1]
          %v917 = vlaneseq
          %v918 = vshrl.u32 %v917, 7
          %v919 = vsub.s32 0, %v918
          %v920 = vrot.slane %v915, %v919
          %922 = vmatprep.subr.mxu0 0.0
          %923 = vmatpush1.msra.mxu0 %v911
          %924 = vmatprep.subr.mxu0 0.0
          %925 = vmatpush1.msra.mxu0 %v912
          %926 = vmatprep.subr.mxu0 0.0
          %927 = vmatpush1.msra.mxu0 %v913
          %928 = vmatprep.subr.mxu0 0.0
          %929 = vmatpush1.msra.mxu0 %v914
          %930 = vmatprep.subr.mxu0 0.0
          %931 = vmatpush1.msra.mxu0 0.0
          %932 = vmatprep.subr.mxu0 0.0
          %933 = vmatpush1.msra.mxu0 0.0
          %934 = vmatprep.subr.mxu0 0.0
          %935 = vmatpush1.msra.mxu0 0.0
          %936 = vmatprep.subr.mxu0 0.0
          %937 = vmatpush1.msra.mxu0 0.0
          %938 = vmatprep.subr.mxu0 0.0
          %939 = vmatpush1.msra.mxu0 0.0
          %940 = vmatprep.subr.mxu0 0.0
          %941 = vmatpush1.msra.mxu0 0.0
          %942 = vmatprep.subr.mxu0 0.0
          %943 = vmatpush1.msra.mxu0 0.0
          %944 = vmatprep.subr.mxu0 0.0
          %945 = vmatpush1.msra.mxu0 0.0
          %946 = vmatprep.subr.mxu0 0.0
          %947 = vmatpush1.msra.mxu0 0.0
          %948 = vmatprep.subr.mxu0 0.0
          %949 = vmatpush1.msra.mxu0 0.0
          %950 = vmatprep.subr.mxu0 0.0
          %951 = vmatpush1.msra.mxu0 0.0
          %952 = vmatprep.subr.mxu0 0.0
          %953 = vmatpush1.msra.mxu0 0.0
          %954 = vmatprep.subr.mxu0 0.0
          %955 = vmatpush1.msra.mxu0 0.0
          %956 = vmatprep.subr.mxu0 0.0
          %957 = vmatpush1.msra.mxu0 0.0
          %958 = vmatprep.subr.mxu0 0.0
          %959 = vmatpush1.msra.mxu0 0.0
          %960 = vmatprep.subr.mxu0 0.0
          %961 = vmatpush1.msra.mxu0 0.0
          %962 = vmatprep.subr.mxu0 0.0
          %963 = vmatpush1.msra.mxu0 0.0
          %964 = vmatprep.subr.mxu0 0.0
          %965 = vmatpush1.msra.mxu0 0.0
          %966 = vmatprep.subr.mxu0 0.0
          %967 = vmatpush1.msra.mxu0 0.0
          %968 = vmatprep.subr.mxu0 0.0
          %969 = vmatpush1.msra.mxu0 0.0
          %970 = vmatprep.subr.mxu0 0.0
          %971 = vmatpush1.msra.mxu0 0.0
          %972 = vmatprep.subr.mxu0 0.0
          %973 = vmatpush1.msra.mxu0 0.0
          %974 = vmatprep.subr.mxu0 0.0
          %975 = vmatpush1.msra.mxu0 0.0
          %976 = vmatprep.subr.mxu0 0.0
          %977 = vmatpush1.msra.mxu0 0.0
          %978 = vmatprep.subr.mxu0 0.0
          %979 = vmatpush1.msra.mxu0 0.0
          %980 = vmatprep.subr.mxu0 0.0
          %981 = vmatpush1.msra.mxu0 0.0
          %982 = vmatprep.subr.mxu0 0.0
          %983 = vmatpush1.msra.mxu0 0.0
          %984 = vmatprep.subr.mxu0 0.0
          %985 = vmatpush1.msra.mxu0 0.0
          %986 = vmatprep.mubr.f32.mxu0 0.0
          %987 = vmatmul.mubr.f32.gmra.mrb[0].mxu0 %v838
          %v988 = vpop.f32.mrb[0].mxu0
          %v989 = vadd.f32 %v920, %v988
          %v990 = vpop.f32.mrb[0].mxu0
          %991 = vdwg.mxu0
          %992 = vst.msk [vmem:[#allocation3] sm:$0xff] %vm795, %v989
        $region160: #{tpu_custom_call.1} parent=87 // pred_fallthru
          _
        %s993 = smul.u32 %s47, 8
        %s994 = scalar_lea.vmem %s675, %s993 [#allocation5]
        %v995 = vld [vmem:[%s994] sm:$0xff]
        %vm996 = vcmask 261120
        %v997 = vsel %vm996, %v995, 0.0
        %998 = vadd.xlane.f32.xlu0 %v997
        %v999 = vpop.xlane.xlu0 %998
        %v1000 = vrcp.pop 32.0
        %v1001 = vmul.f32 %v999, %v1000
        %v1002 = vsub.f32 %v995, %v1001
        %v1003 = vmul.f32 %v1002, %v1002
        %v1004 = vsel %vm996, %v1003, 0.0
        %1005 = vadd.xlane.f32.xlu0 %v1004
        %v1006 = vpop.xlane.xlu0 %1005
        %v1007 = vmul.f32 %v1006, %v1000
        %v1008 = vadd.f32 %v1007, 1e-05
        %v1009 = vrsqrt.pop %v1008
        %v1010 = vmul.f32 %v1002, %v1009
        %v1011 = vld [vmem:[#allocation8] sm:$0x1]
        %v1013 = vlaneseq
        %v1014 = vshrl.u32 %v1013, 7
        %v1015 = vsub.s32 0, %v1014
        %v1016 = vrot.slane %v1011, %v1015
        %v1018 = vmul.f32 %v1010, %v1016
        %v1019 = vld [vmem:[#allocation10] sm:$0x1]
        %v1021 = vlaneseq
        %v1022 = vshrl.u32 %v1021, 7
        %v1023 = vsub.s32 0, %v1022
        %v1024 = vrot.slane %v1019, %v1023
        %v1026 = vadd.f32 %v1018, %v1024
        %v1027 = vld [vmem:[#allocation11] sm:$0xff]
        %v1028 = vld [vmem:[#allocation11 + $0x8] sm:$0xff]
        %v1029 = vld [vmem:[#allocation11 + $0x10] sm:$0xff]
        %v1030 = vld [vmem:[#allocation11 + $0x18] sm:$0xff]
        %v1031 = vld [vmem:[#allocation13] sm:$0x1]
        %v1033 = vlaneseq
        %v1034 = vshrl.u32 %v1033, 7
        %v1035 = vsub.s32 0, %v1034
        %v1036 = vrot.slane %v1031, %v1035
        %v1039 = vsel %vm996, %v1026, 0
        %1041 = vmatprep.subr.mxu0 0.0
        %1042 = vmatpush1.msra.mxu0 %v1027
        %1043 = vmatprep.subr.mxu0 0.0
        %1044 = vmatpush1.msra.mxu0 %v1028
        %1045 = vmatprep.subr.mxu0 0.0
        %1046 = vmatpush1.msra.mxu0 %v1029
        %1047 = vmatprep.subr.mxu0 0.0
        %1048 = vmatpush1.msra.mxu0 %v1030
        %1049 = vmatprep.subr.mxu0 0.0
        %1050 = vmatpush1.msra.mxu0 0.0
        %1051 = vmatprep.subr.mxu0 0.0
        %1052 = vmatpush1.msra.mxu0 0.0
        %1053 = vmatprep.subr.mxu0 0.0
        %1054 = vmatpush1.msra.mxu0 0.0
        %1055 = vmatprep.subr.mxu0 0.0
        %1056 = vmatpush1.msra.mxu0 0.0
        %1057 = vmatprep.subr.mxu0 0.0
        %1058 = vmatpush1.msra.mxu0 0.0
        %1059 = vmatprep.subr.mxu0 0.0
        %1060 = vmatpush1.msra.mxu0 0.0
        %1061 = vmatprep.subr.mxu0 0.0
        %1062 = vmatpush1.msra.mxu0 0.0
        %1063 = vmatprep.subr.mxu0 0.0
        %1064 = vmatpush1.msra.mxu0 0.0
        %1065 = vmatprep.subr.mxu0 0.0
        %1066 = vmatpush1.msra.mxu0 0.0
        %1067 = vmatprep.subr.mxu0 0.0
        %1068 = vmatpush1.msra.mxu0 0.0
        %1069 = vmatprep.subr.mxu0 0.0
        %1070 = vmatpush1.msra.mxu0 0.0
        %1071 = vmatprep.subr.mxu0 0.0
        %1072 = vmatpush1.msra.mxu0 0.0
        %1073 = vmatprep.subr.mxu0 0.0
        %1074 = vmatpush1.msra.mxu0 0.0
        %1075 = vmatprep.subr.mxu0 0.0
        %1076 = vmatpush1.msra.mxu0 0.0
        %1077 = vmatprep.subr.mxu0 0.0
        %1078 = vmatpush1.msra.mxu0 0.0
        %1079 = vmatprep.subr.mxu0 0.0
        %1080 = vmatpush1.msra.mxu0 0.0
        %1081 = vmatprep.subr.mxu0 0.0
        %1082 = vmatpush1.msra.mxu0 0.0
        %1083 = vmatprep.subr.mxu0 0.0
        %1084 = vmatpush1.msra.mxu0 0.0
        %1085 = vmatprep.subr.mxu0 0.0
        %1086 = vmatpush1.msra.mxu0 0.0
        %1087 = vmatprep.subr.mxu0 0.0
        %1088 = vmatpush1.msra.mxu0 0.0
        %1089 = vmatprep.subr.mxu0 0.0
        %1090 = vmatpush1.msra.mxu0 0.0
        %1091 = vmatprep.subr.mxu0 0.0
        %1092 = vmatpush1.msra.mxu0 0.0
        %1093 = vmatprep.subr.mxu0 0.0
        %1094 = vmatpush1.msra.mxu0 0.0
        %1095 = vmatprep.subr.mxu0 0.0
        %1096 = vmatpush1.msra.mxu0 0.0
        %1097 = vmatprep.subr.mxu0 0.0
        %1098 = vmatpush1.msra.mxu0 0.0
        %1099 = vmatprep.subr.mxu0 0.0
        %1100 = vmatpush1.msra.mxu0 0.0
        %1101 = vmatprep.subr.mxu0 0.0
        %1102 = vmatpush1.msra.mxu0 0.0
        %1103 = vmatprep.subr.mxu0 0.0
        %1104 = vmatpush1.msra.mxu0 0.0
        %1105 = vmatprep.mubr.f32.mxu0 0.0
        %1106 = vmatmul.mubr.f32.gmra.mrb[0].mxu0 %v1039
        %v1107 = vpop.f32.mrb[0].mxu0
        %v1108 = vadd.f32 %v1036, %v1107
        %v1109 = vpop.f32.mrb[0].mxu0
        %1110 = vdwg.mxu0
        %v1111 = vld [vmem:[#allocation2] sm:$0xff]
        %vm1112 = vcmask 64512
        %v1114 = vsel %vm1112, %v1108, 0
        %v1117 = vsel %vm1112, %v1111, 0
        %1119 = vmatprep.subr.mxu0 0.0
        %1120 = vmatpush1.xpose.msra.mxu0 %v1117
        %1121 = vmatprep.subr.mxu0 0.0
        %1122 = vmatpush1.xpose.msra.mxu0 0.0
        %1123 = vmatprep.subr.mxu0 0.0
        %1124 = vmatpush1.xpose.msra.mxu0 0.0
        %1125 = vmatprep.subr.mxu0 0.0
        %1126 = vmatpush1.xpose.msra.mxu0 0.0
        %1127 = vmatprep.subr.mxu0 0.0
        %1128 = vmatpush1.xpose.msra.mxu0 0.0
        %1129 = vmatprep.subr.mxu0 0.0
        %1130 = vmatpush1.xpose.msra.mxu0 0.0
        %1131 = vmatprep.subr.mxu0 0.0
        %1132 = vmatpush1.xpose.msra.mxu0 0.0
        %1133 = vmatprep.subr.mxu0 0.0
        %1134 = vmatpush1.xpose.msra.mxu0 0.0
        %1135 = vmatprep.subr.mxu0 0.0
        %1136 = vmatpush1.xpose.msra.mxu0 0.0
        %1137 = vmatprep.subr.mxu0 0.0
        %1138 = vmatpush1.xpose.msra.mxu0 0.0
        %1139 = vmatprep.subr.mxu0 0.0
        %1140 = vmatpush1.xpose.msra.mxu0 0.0
        %1141 = vmatprep.subr.mxu0 0.0
        %1142 = vmatpush1.xpose.msra.mxu0 0.0
        %1143 = vmatprep.subr.mxu0 0.0
        %1144 = vmatpush1.xpose.msra.mxu0 0.0
        %1145 = vmatprep.subr.mxu0 0.0
        %1146 = vmatpush1.xpose.msra.mxu0 0.0
        %1147 = vmatprep.subr.mxu0 0.0
        %1148 = vmatpush1.xpose.msra.mxu0 0.0
        %1149 = vmatprep.subr.mxu0 0.0
        %1150 = vmatpush1.xpose.msra.mxu0 0.0
        %1151 = vmatprep.subr.mxu0 0.0
        %1152 = vmatpush1.xpose.msra.mxu0 0.0
        %1153 = vmatprep.subr.mxu0 0.0
        %1154 = vmatpush1.xpose.msra.mxu0 0.0
        %1155 = vmatprep.subr.mxu0 0.0
        %1156 = vmatpush1.xpose.msra.mxu0 0.0
        %1157 = vmatprep.subr.mxu0 0.0
        %1158 = vmatpush1.xpose.msra.mxu0 0.0
        %1159 = vmatprep.subr.mxu0 0.0
        %1160 = vmatpush1.xpose.msra.mxu0 0.0
        %1161 = vmatprep.subr.mxu0 0.0
        %1162 = vmatpush1.xpose.msra.mxu0 0.0
        %1163 = vmatprep.subr.mxu0 0.0
        %1164 = vmatpush1.xpose.msra.mxu0 0.0
        %1165 = vmatprep.subr.mxu0 0.0
        %1166 = vmatpush1.xpose.msra.mxu0 0.0
        %1167 = vmatprep.subr.mxu0 0.0
        %1168 = vmatpush1.xpose.msra.mxu0 0.0
        %1169 = vmatprep.subr.mxu0 0.0
        %1170 = vmatpush1.xpose.msra.mxu0 0.0
        %1171 = vmatprep.subr.mxu0 0.0
        %1172 = vmatpush1.xpose.msra.mxu0 0.0
        %1173 = vmatprep.subr.mxu0 0.0
        %1174 = vmatpush1.xpose.msra.mxu0 0.0
        %1175 = vmatprep.subr.mxu0 0.0
        %1176 = vmatpush1.xpose.msra.mxu0 0.0
        %1177 = vmatprep.subr.mxu0 0.0
        %1178 = vmatpush1.xpose.msra.mxu0 0.0
        %1179 = vmatprep.subr.mxu0 0.0
        %1180 = vmatpush1.xpose.msra.mxu0 0.0
        %1181 = vmatprep.subr.mxu0 0.0
        %1182 = vmatpush1.xpose.msra.mxu0 0.0
        %1183 = vmatprep.mubr.f32.mxu0 0.0
        %1184 = vmatmul.mubr.f32.gmra.mrb[0].mxu0 %v1114
        %v1185 = vpop.f32.mrb[0].mxu0
        %v1186 = vadd.f32 0.0, %v1185
        %v1187 = vpop.f32.mrb[0].mxu0
        %1188 = vdwg.mxu0
        %v1189 = vsel %vm1112, %v1186, -inf
        %1190 = vmax.xlane.f32.xlu0 %v1189
        %v1191 = vpop.xlane.xlu0 %1190
        %v1192 = vsub.f32 %v1186, %v1191
        %v1193 = vmul.f32 %v1192, 1.442695
        %v1194 = vpow.pop %v1193
        %v1195 = vsel %vm1112, %v1194, 0.0
        %1196 = vadd.xlane.f32.xlu0 %v1195
        %v1197 = vpop.xlane.xlu0 %1196
        %v1198 = vrcp.pop %v1197
        %v1199 = vld [vmem:[#allocation3] sm:$0xff]
        %v1201 = vsel %vm1112, %v1194, 0
        %1203 = vmatprep.subr.mxu0 0.0
        %1204 = vmatpush1.msra.mxu0 %v1199
        %1205 = vmatprep.subr.mxu0 0.0
        %1206 = vmatpush1.msra.mxu0 0.0
        %1207 = vmatprep.subr.mxu0 0.0
        %1208 = vmatpush1.msra.mxu0 0.0
        %1209 = vmatprep.subr.mxu0 0.0
        %1210 = vmatpush1.msra.mxu0 0.0
        %1211 = vmatprep.subr.mxu0 0.0
        %1212 = vmatpush1.msra.mxu0 0.0
        %1213 = vmatprep.subr.mxu0 0.0
        %1214 = vmatpush1.msra.mxu0 0.0
        %1215 = vmatprep.subr.mxu0 0.0
        %1216 = vmatpush1.msra.mxu0 0.0
        %1217 = vmatprep.subr.mxu0 0.0
        %1218 = vmatpush1.msra.mxu0 0.0
        %1219 = vmatprep.subr.mxu0 0.0
        %1220 = vmatpush1.msra.mxu0 0.0
        %1221 = vmatprep.subr.mxu0 0.0
        %1222 = vmatpush1.msra.mxu0 0.0
        %1223 = vmatprep.subr.mxu0 0.0
        %1224 = vmatpush1.msra.mxu0 0.0
        %1225 = vmatprep.subr.mxu0 0.0
        %1226 = vmatpush1.msra.mxu0 0.0
        %1227 = vmatprep.subr.mxu0 0.0
        %1228 = vmatpush1.msra.mxu0 0.0
        %1229 = vmatprep.subr.mxu0 0.0
        %1230 = vmatpush1.msra.mxu0 0.0
        %1231 = vmatprep.subr.mxu0 0.0
        %1232 = vmatpush1.msra.mxu0 0.0
        %1233 = vmatprep.subr.mxu0 0.0
        %1234 = vmatpush1.msra.mxu0 0.0
        %1235 = vmatprep.subr.mxu0 0.0
        %1236 = vmatpush1.msra.mxu0 0.0
        %1237 = vmatprep.subr.mxu0 0.0
        %1238 = vmatpush1.msra.mxu0 0.0
        %1239 = vmatprep.subr.mxu0 0.0
        %1240 = vmatpush1.msra.mxu0 0.0
        %1241 = vmatprep.subr.mxu0 0.0
        %1242 = vmatpush1.msra.mxu0 0.0
        %1243 = vmatprep.subr.mxu0 0.0
        %1244 = vmatpush1.msra.mxu0 0.0
        %1245 = vmatprep.subr.mxu0 0.0
        %1246 = vmatpush1.msra.mxu0 0.0
        %1247 = vmatprep.subr.mxu0 0.0
        %1248 = vmatpush1.msra.mxu0 0.0
        %1249 = vmatprep.subr.mxu0 0.0
        %1250 = vmatpush1.msra.mxu0 0.0
        %1251 = vmatprep.subr.mxu0 0.0
        %1252 = vmatpush1.msra.mxu0 0.0
        %1253 = vmatprep.subr.mxu0 0.0
        %1254 = vmatpush1.msra.mxu0 0.0
        %1255 = vmatprep.subr.mxu0 0.0
        %1256 = vmatpush1.msra.mxu0 0.0
        %1257 = vmatprep.subr.mxu0 0.0
        %1258 = vmatpush1.msra.mxu0 0.0
        %1259 = vmatprep.subr.mxu0 0.0
        %1260 = vmatpush1.msra.mxu0 0.0
        %1261 = vmatprep.subr.mxu0 0.0
        %1262 = vmatpush1.msra.mxu0 0.0
        %1263 = vmatprep.subr.mxu0 0.0
        %1264 = vmatpush1.msra.mxu0 0.0
        %1265 = vmatprep.subr.mxu0 0.0
        %1266 = vmatpush1.msra.mxu0 0.0
        %1267 = vmatprep.mubr.f32.mxu0 0.0
        %1268 = vmatmul.mubr.f32.gmra.mrb[0].mxu0 %v1201
        %v1269 = vpop.f32.mrb[0].mxu0
        %v1270 = vadd.f32 0.0, %v1269
        %v1271 = vpop.f32.mrb[0].mxu0
        %1272 = vdwg.mxu0
        %v1273 = vmul.f32 %v1270, %v1198
        %1274 = vst.msk [vmem:[#allocation4] sm:$0xff] %vm1112, %v1273
        %v1275 = vld [vmem:[#allocation2] sm:$0xff]
        %1276 = vrot.lane.b32.xlu0 %v1108, 120
        %v1277 = vpop.permute.xlu0 %1276
        %1279 = vrot.lane.b32.xlu0 %v1275, 120
        %v1280 = vpop.permute.xlu0 %1279
        %v1281 = vsel %vm1112, %v1277, 0
        %v1283 = vsel %vm1112, %v1280, 0
        %1285 = vmatprep.subr.mxu0 0.0
        %1286 = vmatpush1.xpose.msra.mxu0 %v1283
        %1287 = vmatprep.subr.mxu0 0.0
        %1288 = vmatpush1.xpose.msra.mxu0 0.0
        %1289 = vmatprep.subr.mxu0 0.0
        %1290 = vmatpush1.xpose.msra.mxu0 0.0
        %1291 = vmatprep.subr.mxu0 0.0
        %1292 = vmatpush1.xpose.msra.mxu0 0.0
        %1293 = vmatprep.subr.mxu0 0.0
        %1294 = vmatpush1.xpose.msra.mxu0 0.0
        %1295 = vmatprep.subr.mxu0 0.0
        %1296 = vmatpush1.xpose.msra.mxu0 0.0
        %1297 = vmatprep.subr.mxu0 0.0
        %1298 = vmatpush1.xpose.msra.mxu0 0.0
        %1299 = vmatprep.subr.mxu0 0.0
        %1300 = vmatpush1.xpose.msra.mxu0 0.0
        %1301 = vmatprep.subr.mxu0 0.0
        %1302 = vmatpush1.xpose.msra.mxu0 0.0
        %1303 = vmatprep.subr.mxu0 0.0
        %1304 = vmatpush1.xpose.msra.mxu0 0.0
        %1305 = vmatprep.subr.mxu0 0.0
        %1306 = vmatpush1.xpose.msra.mxu0 0.0
        %1307 = vmatprep.subr.mxu0 0.0
        %1308 = vmatpush1.xpose.msra.mxu0 0.0
        %1309 = vmatprep.subr.mxu0 0.0
        %1310 = vmatpush1.xpose.msra.mxu0 0.0
        %1311 = vmatprep.subr.mxu0 0.0
        %1312 = vmatpush1.xpose.msra.mxu0 0.0
        %1313 = vmatprep.subr.mxu0 0.0
        %1314 = vmatpush1.xpose.msra.mxu0 0.0
        %1315 = vmatprep.subr.mxu0 0.0
        %1316 = vmatpush1.xpose.msra.mxu0 0.0
        %1317 = vmatprep.subr.mxu0 0.0
        %1318 = vmatpush1.xpose.msra.mxu0 0.0
        %1319 = vmatprep.subr.mxu0 0.0
        %1320 = vmatpush1.xpose.msra.mxu0 0.0
        %1321 = vmatprep.subr.mxu0 0.0
        %1322 = vmatpush1.xpose.msra.mxu0 0.0
        %1323 = vmatprep.subr.mxu0 0.0
        %1324 = vmatpush1.xpose.msra.mxu0 0.0
        %1325 = vmatprep.subr.mxu0 0.0
        %1326 = vmatpush1.xpose.msra.mxu0 0.0
        %1327 = vmatprep.subr.mxu0 0.0
        %1328 = vmatpush1.xpose.msra.mxu0 0.0
        %1329 = vmatprep.subr.mxu0 0.0
        %1330 = vmatpush1.xpose.msra.mxu0 0.0
        %1331 = vmatprep.subr.mxu0 0.0
        %1332 = vmatpush1.xpose.msra.mxu0 0.0
        %1333 = vmatprep.subr.mxu0 0.0
        %1334 = vmatpush1.xpose.msra.mxu0 0.0
        %1335 = vmatprep.subr.mxu0 0.0
        %1336 = vmatpush1.xpose.msra.mxu0 0.0
        %1337 = vmatprep.subr.mxu0 0.0
        %1338 = vmatpush1.xpose.msra.mxu0 0.0
        %1339 = vmatprep.subr.mxu0 0.0
        %1340 = vmatpush1.xpose.msra.mxu0 0.0
        %1341 = vmatprep.subr.mxu0 0.0
        %1342 = vmatpush1.xpose.msra.mxu0 0.0
        %1343 = vmatprep.subr.mxu0 0.0
        %1344 = vmatpush1.xpose.msra.mxu0 0.0
        %1345 = vmatprep.subr.mxu0 0.0
        %1346 = vmatpush1.xpose.msra.mxu0 0.0
        %1347 = vmatprep.subr.mxu0 0.0
        %1348 = vmatpush1.xpose.msra.mxu0 0.0
        %1349 = vmatprep.mubr.f32.mxu0 0.0
        %1350 = vmatmul.mubr.f32.gmra.mrb[0].mxu0 %v1281
        %v1351 = vpop.f32.mrb[0].mxu0
        %v1352 = vadd.f32 0.0, %v1351
        %v1353 = vpop.f32.mrb[0].mxu0
        %1354 = vdwg.mxu0
        %v1355 = vsel %vm1112, %v1352, -inf
        %1356 = vmax.xlane.f32.xlu0 %v1355
        %v1357 = vpop.xlane.xlu0 %1356
        %v1358 = vsub.f32 %v1352, %v1357
        %v1359 = vmul.f32 %v1358, 1.442695
        %v1360 = vpow.pop %v1359
        %v1361 = vsel %vm1112, %v1360, 0.0
        %1362 = vadd.xlane.f32.xlu0 %v1361
        %v1363 = vpop.xlane.xlu0 %1362
        %v1364 = vrcp.pop %v1363
        %v1365 = vld [vmem:[#allocation3] sm:$0xff]
        %1367 = vrot.lane.b32.xlu0 %v1365, 120
        %v1368 = vpop.permute.xlu0 %1367
        %v1371 = vsel %vm1112, %v1360, 0
        %1373 = vmatprep.subr.mxu0 0.0
        %1374 = vmatpush1.msra.mxu0 %v1368
        %1375 = vmatprep.subr.mxu0 0.0
        %1376 = vmatpush1.msra.mxu0 0.0
        %1377 = vmatprep.subr.mxu0 0.0
        %1378 = vmatpush1.msra.mxu0 0.0
        %1379 = vmatprep.subr.mxu0 0.0
        %1380 = vmatpush1.msra.mxu0 0.0
        %1381 = vmatprep.subr.mxu0 0.0
        %1382 = vmatpush1.msra.mxu0 0.0
        %1383 = vmatprep.subr.mxu0 0.0
        %1384 = vmatpush1.msra.mxu0 0.0
        %1385 = vmatprep.subr.mxu0 0.0
        %1386 = vmatpush1.msra.mxu0 0.0
        %1387 = vmatprep.subr.mxu0 0.0
        %1388 = vmatpush1.msra.mxu0 0.0
        %1389 = vmatprep.subr.mxu0 0.0
        %1390 = vmatpush1.msra.mxu0 0.0
        %1391 = vmatprep.subr.mxu0 0.0
        %1392 = vmatpush1.msra.mxu0 0.0
        %1393 = vmatprep.subr.mxu0 0.0
        %1394 = vmatpush1.msra.mxu0 0.0
        %1395 = vmatprep.subr.mxu0 0.0
        %1396 = vmatpush1.msra.mxu0 0.0
        %1397 = vmatprep.subr.mxu0 0.0
        %1398 = vmatpush1.msra.mxu0 0.0
        %1399 = vmatprep.subr.mxu0 0.0
        %1400 = vmatpush1.msra.mxu0 0.0
        %1401 = vmatprep.subr.mxu0 0.0
        %1402 = vmatpush1.msra.mxu0 0.0
        %1403 = vmatprep.subr.mxu0 0.0
        %1404 = vmatpush1.msra.mxu0 0.0
        %1405 = vmatprep.subr.mxu0 0.0
        %1406 = vmatpush1.msra.mxu0 0.0
        %1407 = vmatprep.subr.mxu0 0.0
        %1408 = vmatpush1.msra.mxu0 0.0
        %1409 = vmatprep.subr.mxu0 0.0
        %1410 = vmatpush1.msra.mxu0 0.0
        %1411 = vmatprep.subr.mxu0 0.0
        %1412 = vmatpush1.msra.mxu0 0.0
        %1413 = vmatprep.subr.mxu0 0.0
        %1414 = vmatpush1.msra.mxu0 0.0
        %1415 = vmatprep.subr.mxu0 0.0
        %1416 = vmatpush1.msra.mxu0 0.0
        %1417 = vmatprep.subr.mxu0 0.0
        %1418 = vmatpush1.msra.mxu0 0.0
        %1419 = vmatprep.subr.mxu0 0.0
        %1420 = vmatpush1.msra.mxu0 0.0
        %1421 = vmatprep.subr.mxu0 0.0
        %1422 = vmatpush1.msra.mxu0 0.0
        %1423 = vmatprep.subr.mxu0 0.0
        %1424 = vmatpush1.msra.mxu0 0.0
        %1425 = vmatprep.subr.mxu0 0.0
        %1426 = vmatpush1.msra.mxu0 0.0
        %1427 = vmatprep.subr.mxu0 0.0
        %1428 = vmatpush1.msra.mxu0 0.0
        %1429 = vmatprep.subr.mxu0 0.0
        %1430 = vmatpush1.msra.mxu0 0.0
        %1431 = vmatprep.subr.mxu0 0.0
        %1432 = vmatpush1.msra.mxu0 0.0
        %1433 = vmatprep.subr.mxu0 0.0
        %1434 = vmatpush1.msra.mxu0 0.0
        %1435 = vmatprep.subr.mxu0 0.0
        %1436 = vmatpush1.msra.mxu0 0.0
        %1437 = vmatprep.mubr.f32.mxu0 0.0
        %1438 = vmatmul.mubr.f32.gmra.mrb[0].mxu0 %v1371
        %v1439 = vpop.f32.mrb[0].mxu0
        %v1440 = vadd.f32 0.0, %v1439
        %v1441 = vpop.f32.mrb[0].mxu0
        %1442 = vdwg.mxu0
        %v1443 = vmul.f32 %v1440, %v1364
        %1445 = vrot.lane.b32.xlu0 %v1443, 8
        %v1446 = vpop.permute.xlu0 %1445
        %vm1448 = vcmask 130112
        %1449 = vst.msk [vmem:[#allocation4] sm:$0xff] %vm1448, %v1446
        %v1450 = vld [vmem:[#allocation2] sm:$0xff]
        %1451 = vrot.lane.b32.xlu0 %v1108, 112
        %v1452 = vpop.permute.xlu0 %1451
        %1454 = vrot.lane.b32.xlu0 %v1450, 112
        %v1455 = vpop.permute.xlu0 %1454
        %v1456 = vsel %vm1112, %v1452, 0
        %v1458 = vsel %vm1112, %v1455, 0
        %1460 = vmatprep.subr.mxu0 0.0
        %1461 = vmatpush1.xpose.msra.mxu0 %v1458
        %1462 = vmatprep.subr.mxu0 0.0
        %1463 = vmatpush1.xpose.msra.mxu0 0.0
        %1464 = vmatprep.subr.mxu0 0.0
        %1465 = vmatpush1.xpose.msra.mxu0 0.0
        %1466 = vmatprep.subr.mxu0 0.0
        %1467 = vmatpush1.xpose.msra.mxu0 0.0
        %1468 = vmatprep.subr.mxu0 0.0
        %1469 = vmatpush1.xpose.msra.mxu0 0.0
        %1470 = vmatprep.subr.mxu0 0.0
        %1471 = vmatpush1.xpose.msra.mxu0 0.0
        %1472 = vmatprep.subr.mxu0 0.0
        %1473 = vmatpush1.xpose.msra.mxu0 0.0
        %1474 = vmatprep.subr.mxu0 0.0
        %1475 = vmatpush1.xpose.msra.mxu0 0.0
        %1476 = vmatprep.subr.mxu0 0.0
        %1477 = vmatpush1.xpose.msra.mxu0 0.0
        %1478 = vmatprep.subr.mxu0 0.0
        %1479 = vmatpush1.xpose.msra.mxu0 0.0
        %1480 = vmatprep.subr.mxu0 0.0
        %1481 = vmatpush1.xpose.msra.mxu0 0.0
        %1482 = vmatprep.subr.mxu0 0.0
        %1483 = vmatpush1.xpose.msra.mxu0 0.0
        %1484 = vmatprep.subr.mxu0 0.0
        %1485 = vmatpush1.xpose.msra.mxu0 0.0
        %1486 = vmatprep.subr.mxu0 0.0
        %1487 = vmatpush1.xpose.msra.mxu0 0.0
        %1488 = vmatprep.subr.mxu0 0.0
        %1489 = vmatpush1.xpose.msra.mxu0 0.0
        %1490 = vmatprep.subr.mxu0 0.0
        %1491 = vmatpush1.xpose.msra.mxu0 0.0
        %1492 = vmatprep.subr.mxu0 0.0
        %1493 = vmatpush1.xpose.msra.mxu0 0.0
        %1494 = vmatprep.subr.mxu0 0.0
        %1495 = vmatpush1.xpose.msra.mxu0 0.0
        %1496 = vmatprep.subr.mxu0 0.0
        %1497 = vmatpush1.xpose.msra.mxu0 0.0
        %1498 = vmatprep.subr.mxu0 0.0
        %1499 = vmatpush1.xpose.msra.mxu0 0.0
        %1500 = vmatprep.subr.mxu0 0.0
        %1501 = vmatpush1.xpose.msra.mxu0 0.0
        %1502 = vmatprep.subr.mxu0 0.0
        %1503 = vmatpush1.xpose.msra.mxu0 0.0
        %1504 = vmatprep.subr.mxu0 0.0
        %1505 = vmatpush1.xpose.msra.mxu0 0.0
        %1506 = vmatprep.subr.mxu0 0.0
        %1507 = vmatpush1.xpose.msra.mxu0 0.0
        %1508 = vmatprep.subr.mxu0 0.0
        %1509 = vmatpush1.xpose.msra.mxu0 0.0
        %1510 = vmatprep.subr.mxu0 0.0
        %1511 = vmatpush1.xpose.msra.mxu0 0.0
        %1512 = vmatprep.subr.mxu0 0.0
        %1513 = vmatpush1.xpose.msra.mxu0 0.0
        %1514 = vmatprep.subr.mxu0 0.0
        %1515 = vmatpush1.xpose.msra.mxu0 0.0
        %1516 = vmatprep.subr.mxu0 0.0
        %1517 = vmatpush1.xpose.msra.mxu0 0.0
        %1518 = vmatprep.subr.mxu0 0.0
        %1519 = vmatpush1.xpose.msra.mxu0 0.0
        %1520 = vmatprep.subr.mxu0 0.0
        %1521 = vmatpush1.xpose.msra.mxu0 0.0
        %1522 = vmatprep.subr.mxu0 0.0
        %1523 = vmatpush1.xpose.msra.mxu0 0.0
        %1524 = vmatprep.mubr.f32.mxu0 0.0
        %1525 = vmatmul.mubr.f32.gmra.mrb[0].mxu0 %v1456
        %v1526 = vpop.f32.mrb[0].mxu0
        %v1527 = vadd.f32 0.0, %v1526
        %v1528 = vpop.f32.mrb[0].mxu0
        %1529 = vdwg.mxu0
        %v1530 = vsel %vm1112, %v1527, -inf
        %1531 = vmax.xlane.f32.xlu0 %v1530
        %v1532 = vpop.xlane.xlu0 %1531
        %v1533 = vsub.f32 %v1527, %v1532
        %v1534 = vmul.f32 %v1533, 1.442695
        %v1535 = vpow.pop %v1534
        %v1536 = vsel %vm1112, %v1535, 0.0
        %1537 = vadd.xlane.f32.xlu0 %v1536
        %v1538 = vpop.xlane.xlu0 %1537
        %v1539 = vrcp.pop %v1538
        %v1540 = vld [vmem:[#allocation3] sm:$0xff]
        %1542 = vrot.lane.b32.xlu0 %v1540, 112
        %v1543 = vpop.permute.xlu0 %1542
        %v1546 = vsel %vm1112, %v1535, 0
        %1548 = vmatprep.subr.mxu0 0.0
        %1549 = vmatpush1.msra.mxu0 %v1543
        %1550 = vmatprep.subr.mxu0 0.0
        %1551 = vmatpush1.msra.mxu0 0.0
        %1552 = vmatprep.subr.mxu0 0.0
        %1553 = vmatpush1.msra.mxu0 0.0
        %1554 = vmatprep.subr.mxu0 0.0
        %1555 = vmatpush1.msra.mxu0 0.0
        %1556 = vmatprep.subr.mxu0 0.0
        %1557 = vmatpush1.msra.mxu0 0.0
        %1558 = vmatprep.subr.mxu0 0.0
        %1559 = vmatpush1.msra.mxu0 0.0
        %1560 = vmatprep.subr.mxu0 0.0
        %1561 = vmatpush1.msra.mxu0 0.0
        %1562 = vmatprep.subr.mxu0 0.0
        %1563 = vmatpush1.msra.mxu0 0.0
        %1564 = vmatprep.subr.mxu0 0.0
        %1565 = vmatpush1.msra.mxu0 0.0
        %1566 = vmatprep.subr.mxu0 0.0
        %1567 = vmatpush1.msra.mxu0 0.0
        %1568 = vmatprep.subr.mxu0 0.0
        %1569 = vmatpush1.msra.mxu0 0.0
        %1570 = vmatprep.subr.mxu0 0.0
        %1571 = vmatpush1.msra.mxu0 0.0
        %1572 = vmatprep.subr.mxu0 0.0
        %1573 = vmatpush1.msra.mxu0 0.0
        %1574 = vmatprep.subr.mxu0 0.0
        %1575 = vmatpush1.msra.mxu0 0.0
        %1576 = vmatprep.subr.mxu0 0.0
        %1577 = vmatpush1.msra.mxu0 0.0
        %1578 = vmatprep.subr.mxu0 0.0
        %1579 = vmatpush1.msra.mxu0 0.0
        %1580 = vmatprep.subr.mxu0 0.0
        %1581 = vmatpush1.msra.mxu0 0.0
        %1582 = vmatprep.subr.mxu0 0.0
        %1583 = vmatpush1.msra.mxu0 0.0
        %1584 = vmatprep.subr.mxu0 0.0
        %1585 = vmatpush1.msra.mxu0 0.0
        %1586 = vmatprep.subr.mxu0 0.0
        %1587 = vmatpush1.msra.mxu0 0.0
        %1588 = vmatprep.subr.mxu0 0.0
        %1589 = vmatpush1.msra.mxu0 0.0
        %1590 = vmatprep.subr.mxu0 0.0
        %1591 = vmatpush1.msra.mxu0 0.0
        %1592 = vmatprep.subr.mxu0 0.0
        %1593 = vmatpush1.msra.mxu0 0.0
        %1594 = vmatprep.subr.mxu0 0.0
        %1595 = vmatpush1.msra.mxu0 0.0
        %1596 = vmatprep.subr.mxu0 0.0
        %1597 = vmatpush1.msra.mxu0 0.0
        %1598 = vmatprep.subr.mxu0 0.0
        %1599 = vmatpush1.msra.mxu0 0.0
        %1600 = vmatprep.subr.mxu0 0.0
        %1601 = vmatpush1.msra.mxu0 0.0
        %1602 = vmatprep.subr.mxu0 0.0
        %1603 = vmatpush1.msra.mxu0 0.0
        %1604 = vmatprep.subr.mxu0 0.0
        %1605 = vmatpush1.msra.mxu0 0.0
        %1606 = vmatprep.subr.mxu0 0.0
        %1607 = vmatpush1.msra.mxu0 0.0
        %1608 = vmatprep.subr.mxu0 0.0
        %1609 = vmatpush1.msra.mxu0 0.0
        %1610 = vmatprep.subr.mxu0 0.0
        %1611 = vmatpush1.msra.mxu0 0.0
        %1612 = vmatprep.mubr.f32.mxu0 0.0
        %1613 = vmatmul.mubr.f32.gmra.mrb[0].mxu0 %v1546
        %v1614 = vpop.f32.mrb[0].mxu0
        %v1615 = vadd.f32 0.0, %v1614
        %v1616 = vpop.f32.mrb[0].mxu0
        %1617 = vdwg.mxu0
        %v1618 = vmul.f32 %v1615, %v1539
        %1620 = vrot.lane.b32.xlu0 %v1618, 16
        %v1621 = vpop.permute.xlu0 %1620
        %vm1623 = vcmask 195712
        %1624 = vst.msk [vmem:[#allocation4] sm:$0xff] %vm1623, %v1621
        %v1625 = vld [vmem:[#allocation2] sm:$0xff]
        %1626 = vrot.lane.b32.xlu0 %v1108, 104
        %v1627 = vpop.permute.xlu0 %1626
        %1629 = vrot.lane.b32.xlu0 %v1625, 104
        %v1630 = vpop.permute.xlu0 %1629
        %v1631 = vsel %vm1112, %v1627, 0
        %v1633 = vsel %vm1112, %v1630, 0
        %1635 = vmatprep.subr.mxu0 0.0
        %1636 = vmatpush1.xpose.msra.mxu0 %v1633
        %1637 = vmatprep.subr.mxu0 0.0
        %1638 = vmatpush1.xpose.msra.mxu0 0.0
        %1639 = vmatprep.subr.mxu0 0.0
        %1640 = vmatpush1.xpose.msra.mxu0 0.0
        %1641 = vmatprep.subr.mxu0 0.0
        %1642 = vmatpush1.xpose.msra.mxu0 0.0
        %1643 = vmatprep.subr.mxu0 0.0
        %1644 = vmatpush1.xpose.msra.mxu0 0.0
        %1645 = vmatprep.subr.mxu0 0.0
        %1646 = vmatpush1.xpose.msra.mxu0 0.0
        %1647 = vmatprep.subr.mxu0 0.0
        %1648 = vmatpush1.xpose.msra.mxu0 0.0
        %1649 = vmatprep.subr.mxu0 0.0
        %1650 = vmatpush1.xpose.msra.mxu0 0.0
        %1651 = vmatprep.subr.mxu0 0.0
        %1652 = vmatpush1.xpose.msra.mxu0 0.0
        %1653 = vmatprep.subr.mxu0 0.0
        %1654 = vmatpush1.xpose.msra.mxu0 0.0
        %1655 = vmatprep.subr.mxu0 0.0
        %1656 = vmatpush1.xpose.msra.mxu0 0.0
        %1657 = vmatprep.subr.mxu0 0.0
        %1658 = vmatpush1.xpose.msra.mxu0 0.0
        %1659 = vmatprep.subr.mxu0 0.0
        %1660 = vmatpush1.xpose.msra.mxu0 0.0
        %1661 = vmatprep.subr.mxu0 0.0
        %1662 = vmatpush1.xpose.msra.mxu0 0.0
        %1663 = vmatprep.subr.mxu0 0.0
        %1664 = vmatpush1.xpose.msra.mxu0 0.0
        %1665 = vmatprep.subr.mxu0 0.0
        %1666 = vmatpush1.xpose.msra.mxu0 0.0
        %1667 = vmatprep.subr.mxu0 0.0
        %1668 = vmatpush1.xpose.msra.mxu0 0.0
        %1669 = vmatprep.subr.mxu0 0.0
        %1670 = vmatpush1.xpose.msra.mxu0 0.0
        %1671 = vmatprep.subr.mxu0 0.0
        %1672 = vmatpush1.xpose.msra.mxu0 0.0
        %1673 = vmatprep.subr.mxu0 0.0
        %1674 = vmatpush1.xpose.msra.mxu0 0.0
        %1675 = vmatprep.subr.mxu0 0.0
        %1676 = vmatpush1.xpose.msra.mxu0 0.0
        %1677 = vmatprep.subr.mxu0 0.0
        %1678 = vmatpush1.xpose.msra.mxu0 0.0
        %1679 = vmatprep.subr.mxu0 0.0
        %1680 = vmatpush1.xpose.msra.mxu0 0.0
        %1681 = vmatprep.subr.mxu0 0.0
        %1682 = vmatpush1.xpose.msra.mxu0 0.0
        %1683 = vmatprep.subr.mxu0 0.0
        %1684 = vmatpush1.xpose.msra.mxu0 0.0
        %1685 = vmatprep.subr.mxu0 0.0
        %1686 = vmatpush1.xpose.msra.mxu0 0.0
        %1687 = vmatprep.subr.mxu0 0.0
        %1688 = vmatpush1.xpose.msra.mxu0 0.0
        %1689 = vmatprep.subr.mxu0 0.0
        %1690 = vmatpush1.xpose.msra.mxu0 0.0
        %1691 = vmatprep.subr.mxu0 0.0
        %1692 = vmatpush1.xpose.msra.mxu0 0.0
        %1693 = vmatprep.subr.mxu0 0.0
        %1694 = vmatpush1.xpose.msra.mxu0 0.0
        %1695 = vmatprep.subr.mxu0 0.0
        %1696 = vmatpush1.xpose.msra.mxu0 0.0
        %1697 = vmatprep.subr.mxu0 0.0
        %1698 = vmatpush1.xpose.msra.mxu0 0.0
        %1699 = vmatprep.mubr.f32.mxu0 0.0
        %1700 = vmatmul.mubr.f32.gmra.mrb[0].mxu0 %v1631
        %v1701 = vpop.f32.mrb[0].mxu0
        %v1702 = vadd.f32 0.0, %v1701
        %v1703 = vpop.f32.mrb[0].mxu0
        %1704 = vdwg.mxu0
        %v1705 = vsel %vm1112, %v1702, -inf
        %1706 = vmax.xlane.f32.xlu0 %v1705
        %v1707 = vpop.xlane.xlu0 %1706
        %v1708 = vsub.f32 %v1702, %v1707
        %v1709 = vmul.f32 %v1708, 1.442695
        %v1710 = vpow.pop %v1709
        %v1711 = vsel %vm1112, %v1710, 0.0
        %1712 = vadd.xlane.f32.xlu0 %v1711
        %v1713 = vpop.xlane.xlu0 %1712
        %v1714 = vrcp.pop %v1713
        %v1715 = vld [vmem:[#allocation3] sm:$0xff]
        %1717 = vrot.lane.b32.xlu0 %v1715, 104
        %v1718 = vpop.permute.xlu0 %1717
        %v1721 = vsel %vm1112, %v1710, 0
        %1723 = vmatprep.subr.mxu0 0.0
        %1724 = vmatpush1.msra.mxu0 %v1718
        %1725 = vmatprep.subr.mxu0 0.0
        %1726 = vmatpush1.msra.mxu0 0.0
        %1727 = vmatprep.subr.mxu0 0.0
        %1728 = vmatpush1.msra.mxu0 0.0
        %1729 = vmatprep.subr.mxu0 0.0
        %1730 = vmatpush1.msra.mxu0 0.0
        %1731 = vmatprep.subr.mxu0 0.0
        %1732 = vmatpush1.msra.mxu0 0.0
        %1733 = vmatprep.subr.mxu0 0.0
        %1734 = vmatpush1.msra.mxu0 0.0
        %1735 = vmatprep.subr.mxu0 0.0
        %1736 = vmatpush1.msra.mxu0 0.0
        %1737 = vmatprep.subr.mxu0 0.0
        %1738 = vmatpush1.msra.mxu0 0.0
        %1739 = vmatprep.subr.mxu0 0.0
        %1740 = vmatpush1.msra.mxu0 0.0
        %1741 = vmatprep.subr.mxu0 0.0
        %1742 = vmatpush1.msra.mxu0 0.0
        %1743 = vmatprep.subr.mxu0 0.0
        %1744 = vmatpush1.msra.mxu0 0.0
        %1745 = vmatprep.subr.mxu0 0.0
        %1746 = vmatpush1.msra.mxu0 0.0
        %1747 = vmatprep.subr.mxu0 0.0
        %1748 = vmatpush1.msra.mxu0 0.0
        %1749 = vmatprep.subr.mxu0 0.0
        %1750 = vmatpush1.msra.mxu0 0.0
        %1751 = vmatprep.subr.mxu0 0.0
        %1752 = vmatpush1.msra.mxu0 0.0
        %1753 = vmatprep.subr.mxu0 0.0
        %1754 = vmatpush1.msra.mxu0 0.0
        %1755 = vmatprep.subr.mxu0 0.0
        %1756 = vmatpush1.msra.mxu0 0.0
        %1757 = vmatprep.subr.mxu0 0.0
        %1758 = vmatpush1.msra.mxu0 0.0
        %1759 = vmatprep.subr.mxu0 0.0
        %1760 = vmatpush1.msra.mxu0 0.0
        %1761 = vmatprep.subr.mxu0 0.0
        %1762 = vmatpush1.msra.mxu0 0.0
        %1763 = vmatprep.subr.mxu0 0.0
        %1764 = vmatpush1.msra.mxu0 0.0
        %1765 = vmatprep.subr.mxu0 0.0
        %1766 = vmatpush1.msra.mxu0 0.0
        %1767 = vmatprep.subr.mxu0 0.0
        %1768 = vmatpush1.msra.mxu0 0.0
        %1769 = vmatprep.subr.mxu0 0.0
        %1770 = vmatpush1.msra.mxu0 0.0
        %1771 = vmatprep.subr.mxu0 0.0
        %1772 = vmatpush1.msra.mxu0 0.0
        %1773 = vmatprep.subr.mxu0 0.0
        %1774 = vmatpush1.msra.mxu0 0.0
        %1775 = vmatprep.subr.mxu0 0.0
        %1776 = vmatpush1.msra.mxu0 0.0
        %1777 = vmatprep.subr.mxu0 0.0
        %1778 = vmatpush1.msra.mxu0 0.0
        %1779 = vmatprep.subr.mxu0 0.0
        %1780 = vmatpush1.msra.mxu0 0.0
        %1781 = vmatprep.subr.mxu0 0.0
        %1782 = vmatpush1.msra.mxu0 0.0
        %1783 = vmatprep.subr.mxu0 0.0
        %1784 = vmatpush1.msra.mxu0 0.0
        %1785 = vmatprep.subr.mxu0 0.0
        %1786 = vmatpush1.msra.mxu0 0.0
        %1787 = vmatprep.mubr.f32.mxu0 0.0
        %1788 = vmatmul.mubr.f32.gmra.mrb[0].mxu0 %v1721
        %v1789 = vpop.f32.mrb[0].mxu0
        %v1790 = vadd.f32 0.0, %v1789
        %v1791 = vpop.f32.mrb[0].mxu0
        %1792 = vdwg.mxu0
        %v1793 = vmul.f32 %v1790, %v1714
        %1795 = vrot.lane.b32.xlu0 %v1793, 24
        %v1796 = vpop.permute.xlu0 %1795
        %vm1798 = vcmask 261312
        %1799 = vst.msk [vmem:[#allocation4] sm:$0xff] %vm1798, %v1796
        %v1800 = vld [vmem:[#allocation4] sm:$0xff]
        %v1801 = vld [vmem:[#allocation20] sm:$0xff]
        %v1802 = vld [vmem:[#allocation20 + $0x8] sm:$0xff]
        %v1803 = vld [vmem:[#allocation20 + $0x10] sm:$0xff]
        %v1804 = vld [vmem:[#allocation20 + $0x18] sm:$0xff]
        %v1805 = vld [vmem:[#allocation22] sm:$0x1]
        %v1807 = vlaneseq
        %v1808 = vshrl.u32 %v1807, 7
        %v1809 = vsub.s32 0, %v1808
        %v1810 = vrot.slane %v1805, %v1809
        %v1813 = vsel %vm996, %v1800, 0
        %1815 = vmatprep.subr.mxu0 0.0
        %1816 = vmatpush1.msra.mxu0 %v1801
        %1817 = vmatprep.subr.mxu0 0.0
        %1818 = vmatpush1.msra.mxu0 %v1802
        %1819 = vmatprep.subr.mxu0 0.0
        %1820 = vmatpush1.msra.mxu0 %v1803
        %1821 = vmatprep.subr.mxu0 0.0
        %1822 = vmatpush1.msra.mxu0 %v1804
        %1823 = vmatprep.subr.mxu0 0.0
        %1824 = vmatpush1.msra.mxu0 0.0
        %1825 = vmatprep.subr.mxu0 0.0
        %1826 = vmatpush1.msra.mxu0 0.0
        %1827 = vmatprep.subr.mxu0 0.0
        %1828 = vmatpush1.msra.mxu0 0.0
        %1829 = vmatprep.subr.mxu0 0.0
        %1830 = vmatpush1.msra.mxu0 0.0
        %1831 = vmatprep.subr.mxu0 0.0
        %1832 = vmatpush1.msra.mxu0 0.0
        %1833 = vmatprep.subr.mxu0 0.0
        %1834 = vmatpush1.msra.mxu0 0.0
        %1835 = vmatprep.subr.mxu0 0.0
        %1836 = vmatpush1.msra.mxu0 0.0
        %1837 = vmatprep.subr.mxu0 0.0
        %1838 = vmatpush1.msra.mxu0 0.0
        %1839 = vmatprep.subr.mxu0 0.0
        %1840 = vmatpush1.msra.mxu0 0.0
        %1841 = vmatprep.subr.mxu0 0.0
        %1842 = vmatpush1.msra.mxu0 0.0
        %1843 = vmatprep.subr.mxu0 0.0
        %1844 = vmatpush1.msra.mxu0 0.0
        %1845 = vmatprep.subr.mxu0 0.0
        %1846 = vmatpush1.msra.mxu0 0.0
        %1847 = vmatprep.subr.mxu0 0.0
        %1848 = vmatpush1.msra.mxu0 0.0
        %1849 = vmatprep.subr.mxu0 0.0
        %1850 = vmatpush1.msra.mxu0 0.0
        %1851 = vmatprep.subr.mxu0 0.0
        %1852 = vmatpush1.msra.mxu0 0.0
        %1853 = vmatprep.subr.mxu0 0.0
        %1854 = vmatpush1.msra.mxu0 0.0
        %1855 = vmatprep.subr.mxu0 0.0
        %1856 = vmatpush1.msra.mxu0 0.0
        %1857 = vmatprep.subr.mxu0 0.0
        %1858 = vmatpush1.msra.mxu0 0.0
        %1859 = vmatprep.subr.mxu0 0.0
        %1860 = vmatpush1.msra.mxu0 0.0
        %1861 = vmatprep.subr.mxu0 0.0
        %1862 = vmatpush1.msra.mxu0 0.0
        %1863 = vmatprep.subr.mxu0 0.0
        %1864 = vmatpush1.msra.mxu0 0.0
        %1865 = vmatprep.subr.mxu0 0.0
        %1866 = vmatpush1.msra.mxu0 0.0
        %1867 = vmatprep.subr.mxu0 0.0
        %1868 = vmatpush1.msra.mxu0 0.0
        %1869 = vmatprep.subr.mxu0 0.0
        %1870 = vmatpush1.msra.mxu0 0.0
        %1871 = vmatprep.subr.mxu0 0.0
        %1872 = vmatpush1.msra.mxu0 0.0
        %1873 = vmatprep.subr.mxu0 0.0
        %1874 = vmatpush1.msra.mxu0 0.0
        %1875 = vmatprep.subr.mxu0 0.0
        %1876 = vmatpush1.msra.mxu0 0.0
        %1877 = vmatprep.subr.mxu0 0.0
        %1878 = vmatpush1.msra.mxu0 0.0
        %1879 = vmatprep.mubr.f32.mxu0 0.0
        %1880 = vmatmul.mubr.f32.gmra.mrb[0].mxu0 %v1813
        %v1881 = vpop.f32.mrb[0].mxu0
        %v1882 = vadd.f32 %v1810, %v1881
        %v1883 = vpop.f32.mrb[0].mxu0
        %1884 = vdwg.mxu0
        %v1885 = vadd.f32 %v1026, %v1882
        %v1886 = vsel %vm996, %v1885, 0.0
        %1887 = vadd.xlane.f32.xlu0 %v1886
        %v1888 = vpop.xlane.xlu0 %1887
        %v1889 = vmul.f32 %v1888, %v1000
        %v1890 = vsub.f32 %v1885, %v1889
        %v1891 = vmul.f32 %v1890, %v1890
        %v1892 = vsel %vm996, %v1891, 0.0
        %1893 = vadd.xlane.f32.xlu0 %v1892
        %v1894 = vpop.xlane.xlu0 %1893
        %v1895 = vmul.f32 %v1894, %v1000
        %v1896 = vadd.f32 %v1895, 1e-05
        %v1897 = vrsqrt.pop %v1896
        %v1898 = vmul.f32 %v1890, %v1897
        %v1899 = vld [vmem:[#allocation23] sm:$0x1]
        %v1901 = vlaneseq
        %v1902 = vshrl.u32 %v1901, 7
        %v1903 = vsub.s32 0, %v1902
        %v1904 = vrot.slane %v1899, %v1903
        %v1906 = vmul.f32 %v1898, %v1904
        %v1907 = vld [vmem:[#allocation25] sm:$0x1]
        %v1909 = vlaneseq
        %v1910 = vshrl.u32 %v1909, 7
        %v1911 = vsub.s32 0, %v1910
        %v1912 = vrot.slane %v1907, %v1911
        %v1914 = vadd.f32 %v1906, %v1912
        %v1915 = vld [vmem:[#allocation26] sm:$0xff]
        %v1916 = vld [vmem:[#allocation26 + $0x8] sm:$0xff]
        %v1917 = vld [vmem:[#allocation26 + $0x10] sm:$0xff]
        %v1918 = vld [vmem:[#allocation26 + $0x18] sm:$0xff]
        %v1919 = vld [vmem:[#allocation28] sm:$0x1]
        %v1921 = vlaneseq
        %v1922 = vshrl.u32 %v1921, 7
        %v1923 = vsub.s32 0, %v1922
        %v1924 = vrot.slane %v1919, %v1923
        %v1927 = vsel %vm996, %v1914, 0
        %1929 = vmatprep.subr.mxu0 0.0
        %1930 = vmatpush1.msra.mxu0 %v1915
        %1931 = vmatprep.subr.mxu0 0.0
        %1932 = vmatpush1.msra.mxu0 %v1916
        %1933 = vmatprep.subr.mxu0 0.0
        %1934 = vmatpush1.msra.mxu0 %v1917
        %1935 = vmatprep.subr.mxu0 0.0
        %1936 = vmatpush1.msra.mxu0 %v1918
        %1937 = vmatprep.subr.mxu0 0.0
        %1938 = vmatpush1.msra.mxu0 0.0
        %1939 = vmatprep.subr.mxu0 0.0
        %1940 = vmatpush1.msra.mxu0 0.0
        %1941 = vmatprep.subr.mxu0 0.0
        %1942 = vmatpush1.msra.mxu0 0.0
        %1943 = vmatprep.subr.mxu0 0.0
        %1944 = vmatpush1.msra.mxu0 0.0
        %1945 = vmatprep.subr.mxu0 0.0
        %1946 = vmatpush1.msra.mxu0 0.0
        %1947 = vmatprep.subr.mxu0 0.0
        %1948 = vmatpush1.msra.mxu0 0.0
        %1949 = vmatprep.subr.mxu0 0.0
        %1950 = vmatpush1.msra.mxu0 0.0
        %1951 = vmatprep.subr.mxu0 0.0
        %1952 = vmatpush1.msra.mxu0 0.0
        %1953 = vmatprep.subr.mxu0 0.0
        %1954 = vmatpush1.msra.mxu0 0.0
        %1955 = vmatprep.subr.mxu0 0.0
        %1956 = vmatpush1.msra.mxu0 0.0
        %1957 = vmatprep.subr.mxu0 0.0
        %1958 = vmatpush1.msra.mxu0 0.0
        %1959 = vmatprep.subr.mxu0 0.0
        %1960 = vmatpush1.msra.mxu0 0.0
        %1961 = vmatprep.subr.mxu0 0.0
        %1962 = vmatpush1.msra.mxu0 0.0
        %1963 = vmatprep.subr.mxu0 0.0
        %1964 = vmatpush1.msra.mxu0 0.0
        %1965 = vmatprep.subr.mxu0 0.0
        %1966 = vmatpush1.msra.mxu0 0.0
        %1967 = vmatprep.subr.mxu0 0.0
        %1968 = vmatpush1.msra.mxu0 0.0
        %1969 = vmatprep.subr.mxu0 0.0
        %1970 = vmatpush1.msra.mxu0 0.0
        %1971 = vmatprep.subr.mxu0 0.0
        %1972 = vmatpush1.msra.mxu0 0.0
        %1973 = vmatprep.subr.mxu0 0.0
        %1974 = vmatpush1.msra.mxu0 0.0
        %1975 = vmatprep.subr.mxu0 0.0
        %1976 = vmatpush1.msra.mxu0 0.0
        %1977 = vmatprep.subr.mxu0 0.0
        %1978 = vmatpush1.msra.mxu0 0.0
        %1979 = vmatprep.subr.mxu0 0.0
        %1980 = vmatpush1.msra.mxu0 0.0
        %1981 = vmatprep.subr.mxu0 0.0
        %1982 = vmatpush1.msra.mxu0 0.0
        %1983 = vmatprep.subr.mxu0 0.0
        %1984 = vmatpush1.msra.mxu0 0.0
        %1985 = vmatprep.subr.mxu0 0.0
        %1986 = vmatpush1.msra.mxu0 0.0
        %1987 = vmatprep.subr.mxu0 0.0
        %1988 = vmatpush1.msra.mxu0 0.0
        %1989 = vmatprep.subr.mxu0 0.0
        %1990 = vmatpush1.msra.mxu0 0.0
        %1991 = vmatprep.subr.mxu0 0.0
        %1992 = vmatpush1.msra.mxu0 0.0
        %1993 = vmatprep.mubr.f32.mxu0 0.0
        %1994 = vmatmul.mubr.f32.gmra.mrb[0].mxu0 %v1927
        %v1995 = vpop.f32.mrb[0].mxu0
        %v1996 = vadd.f32 %v1924, %v1995
        %v1997 = vpop.f32.mrb[0].mxu0
        %1998 = vdwg.mxu0
        %v1999 = vmax.f32 %v1996, 0.0
        %v2000 = vld [vmem:[#allocation29] sm:$0xff]
        %v2001 = vld [vmem:[#allocation29 + $0x8] sm:$0xff]
        %v2002 = vld [vmem:[#allocation29 + $0x10] sm:$0xff]
        %v2003 = vld [vmem:[#allocation29 + $0x18] sm:$0xff]
        %v2004 = vld [vmem:[#allocation29 + $0x20] sm:$0xff]
        %v2005 = vld [vmem:[#allocation29 + $0x28] sm:$0xff]
        %v2006 = vld [vmem:[#allocation29 + $0x30] sm:$0xff]
        %v2007 = vld [vmem:[#allocation29 + $0x38] sm:$0xff]
        %v2008 = vld [vmem:[#allocation31] sm:$0x1]
        %v2010 = vlaneseq
        %v2011 = vshrl.u32 %v2010, 7
        %v2012 = vsub.s32 0, %v2011
        %v2013 = vrot.slane %v2008, %v2012
        %vm2015 = vcmask 523264
        %v2017 = vsel %vm2015, %v1999, 0
        %2019 = vmatprep.subr.mxu0 0.0
        %2020 = vmatpush1.msra.mxu0 %v2000
        %2021 = vmatprep.subr.mxu0 0.0
        %2022 = vmatpush1.msra.mxu0 %v2001
        %2023 = vmatprep.subr.mxu0 0.0
        %2024 = vmatpush1.msra.mxu0 %v2002
        %2025 = vmatprep.subr.mxu0 0.0
        %2026 = vmatpush1.msra.mxu0 %v2003
        %2027 = vmatprep.subr.mxu0 0.0
        %2028 = vmatpush1.msra.mxu0 %v2004
        %2029 = vmatprep.subr.mxu0 0.0
        %2030 = vmatpush1.msra.mxu0 %v2005
        %2031 = vmatprep.subr.mxu0 0.0
        %2032 = vmatpush1.msra.mxu0 %v2006
        %2033 = vmatprep.subr.mxu0 0.0
        %2034 = vmatpush1.msra.mxu0 %v2007
        %2035 = vmatprep.subr.mxu0 0.0
        %2036 = vmatpush1.msra.mxu0 0.0
        %2037 = vmatprep.subr.mxu0 0.0
        %2038 = vmatpush1.msra.mxu0 0.0
        %2039 = vmatprep.subr.mxu0 0.0
        %2040 = vmatpush1.msra.mxu0 0.0
        %2041 = vmatprep.subr.mxu0 0.0
        %2042 = vmatpush1.msra.mxu0 0.0
        %2043 = vmatprep.subr.mxu0 0.0
        %2044 = vmatpush1.msra.mxu0 0.0
        %2045 = vmatprep.subr.mxu0 0.0
        %2046 = vmatpush1.msra.mxu0 0.0
        %2047 = vmatprep.subr.mxu0 0.0
        %2048 = vmatpush1.msra.mxu0 0.0
        %2049 = vmatprep.subr.mxu0 0.0
        %2050 = vmatpush1.msra.mxu0 0.0
        %2051 = vmatprep.subr.mxu0 0.0
        %2052 = vmatpush1.msra.mxu0 0.0
        %2053 = vmatprep.subr.mxu0 0.0
        %2054 = vmatpush1.msra.mxu0 0.0
        %2055 = vmatprep.subr.mxu0 0.0
        %2056 = vmatpush1.msra.mxu0 0.0
        %2057 = vmatprep.subr.mxu0 0.0
        %2058 = vmatpush1.msra.mxu0 0.0
        %2059 = vmatprep.subr.mxu0 0.0
        %2060 = vmatpush1.msra.mxu0 0.0
        %2061 = vmatprep.subr.mxu0 0.0
        %2062 = vmatpush1.msra.mxu0 0.0
        %2063 = vmatprep.subr.mxu0 0.0
        %2064 = vmatpush1.msra.mxu0 0.0
        %2065 = vmatprep.subr.mxu0 0.0
        %2066 = vmatpush1.msra.mxu0 0.0
        %2067 = vmatprep.subr.mxu0 0.0
        %2068 = vmatpush1.msra.mxu0 0.0
        %2069 = vmatprep.subr.mxu0 0.0
        %2070 = vmatpush1.msra.mxu0 0.0
        %2071 = vmatprep.subr.mxu0 0.0
        %2072 = vmatpush1.msra.mxu0 0.0
        %2073 = vmatprep.subr.mxu0 0.0
        %2074 = vmatpush1.msra.mxu0 0.0
        %2075 = vmatprep.subr.mxu0 0.0
        %2076 = vmatpush1.msra.mxu0 0.0
        %2077 = vmatprep.subr.mxu0 0.0
        %2078 = vmatpush1.msra.mxu0 0.0
        %2079 = vmatprep.subr.mxu0 0.0
        %2080 = vmatpush1.msra.mxu0 0.0
        %2081 = vmatprep.subr.mxu0 0.0
        %2082 = vmatpush1.msra.mxu0 0.0
        %2083 = vmatprep.mubr.f32.mxu0 0.0
        %2084 = vmatmul.mubr.f32.gmra.mrb[0].mxu0 %v2017
        %v2085 = vpop.f32.mrb[0].mxu0
        %v2086 = vadd.f32 %v2013, %v2085
        %v2087 = vpop.f32.mrb[0].mxu0
        %2088 = vdwg.mxu0
        %v2089 = vadd.f32 %v1914, %v2086
        %2090 = vst.msk [vmem:[%s789] sm:$0xff] %vm996, %v2089
        %s2091 = sand.u32 %s426, 1
        %s2092 = scalar_lea.sflag [#allocation7], %s2091
        %s2093 = sand.u32 %s426, 1
        %s2094 = smul.addr %s2093, 8
        %s2095 = scalar_lea.vmem [#allocation32], %s2094
        // Predicated region
        $region161: #{tpu_custom_call.1} parent=87 // pred_check
          %p2096 = pneg %p436
        $region162: #{tpu_custom_call.1} parent=87 // pred_check_branch
          %2098 = sbr.rel (%p2096) target = $region164
        $region163: #{tpu_custom_call.1} parent=87 // pred_region
          %s2100 = ssub.s32 128, 128
          %2101 = vsyncadd %s2092, %s2100
          %s2102 = sadd.s32 %s47, %s46
          %s2103 = smul.addr %s2102, 128
          %s2104 = scalar_lea.hbm %s17, %s2103
          %s2106 = sshll.u32 %s2095, 4
          %s2107 = int_to_ptr.vmem [resolvable:$true] %s2106
          %2109 = dma.vmem_to_hbm [thread:$0]  %s2107, 128, %s2104, %s2092
        $region164: #{tpu_custom_call.1} parent=87 // pred_fallthru
          _
      $region88: #{tpu_custom_call.1} parent=5 // pred_fallthru
        _
      %p2110 = scmp.le.s32.totalorder 2, %s37
      // Predicated region
      $region165: #{tpu_custom_call.1} parent=5 // pred_check
        %p2111 = pneg %p2110
      $region166: #{tpu_custom_call.1} parent=5 // pred_check_branch
        %2113 = sbr.rel (%p2111) target = $region168
      $region167: #{tpu_custom_call.1} parent=5 // pred_region
        %s2114 = ssub.s32 %s37, 2
        // Predicated region
        $region169: #{tpu_custom_call.1} parent=167 // pred_check
          %p2115 = pneg %p442
        $region170: #{tpu_custom_call.1} parent=167 // pred_check_branch
          %2117 = sbr.rel (%p2115) target = $region172
        $region171: #{tpu_custom_call.1} parent=167 // pred_region
          %s2118 = sand.u32 %s427, 1
          %s2119 = scalar_lea.sflag [#allocation7], %s2118
          %s2120 = sand.u32 %s427, 1
          %s2121 = smul.addr %s2120, 8
          %s2122 = scalar_lea.vmem [#allocation32], %s2121
          %2123 = dma.done %s2119, 128
        $region172: #{tpu_custom_call.1} parent=167 // pred_fallthru
          _
      $region168: #{tpu_custom_call.1} parent=5 // pred_fallthru
        _
    $region6: #{tpu_custom_call.1} parent=1 // loop_footer
      %s41 = sadd.s32 1, %s37
    $region7: #{tpu_custom_call.1} parent=1 // loop_footer_branch
      %36 = sbr.rel target = $region3
    $region8: #{tpu_custom_call.1} parent=1 // loop_exit
      _
    %2124 = vsyncpa [#allocation6], 1
    %s2125 = scalar_lea.sflag [#allocation6], 1
    %2126 = vsyncpa %s2125, 1
    %2127 = vsyncpa [#allocation9], 1
    %2128 = vsyncpa [#allocation12], 1
    %2129 = vsyncpa [#allocation15], 1
    %2130 = vsyncpa [#allocation18], 1
    %2131 = vsyncpa [#allocation21], 1
    %2132 = vsyncpa [#allocation24], 1
    %2133 = vsyncpa [#allocation27], 1
    %2134 = vsyncpa [#allocation30], 1
    %2135 = vsyncpa [#allocation7], 1
    %s2136 = scalar_lea.sflag [#allocation7], 1
    %2137 = vsyncpa %s2136, 1

</llo_original>
